<compile_context>
chip_gen: v5e
topology: v5e:2x2
jax: 0.10.0
libtpu: 0.0.40
codegen_flags: <defaults>
</compile_context>

<pallas_src>
import math
from functools import partial

import jax
import jax.numpy as jnp
from jax import lax
from jax.experimental import pallas as pl
from jax.experimental.pallas import tpu as pltpu

# ---- model hyper-parameters (from the PyTorch module) ----
B = 2              # demo batch size
S = 4              # INPUT_SEQ_LEN_CNN_TRANSFORMER
E = 128            # HIDDEN_DIM (embed_dim) == one lane width
H = 4              # N_HEAD
DH = E // H        # head dim = 32
FF = 2 * E         # dim_feedforward = 256
OUT = 2            # OUTPUT_DIM
F_IN = 1           # input_feature_dim
NUM_LAYERS = 2
EPS = 1e-5         # PyTorch LayerNorm default eps

# ---- packed-parameter layout ----------------------------------------------
# vecs : (N_VEC_ROWS, 3E)  every bias / LayerNorm / pos-enc / input-proj row.
# wa   : (E, NUM_LAYERS*768 + 128)  [wqkv.T | wo.T | w1.T] per layer, then padded wout.T.
# wb   : (NUM_LAYERS*FF, E)  w2.T per layer, stacked along rows.
VW = 3 * E                         # 384: widest vector row (qkv bias)
ROW_WI, ROW_BI, ROW_BOUT, ROW_POS = 0, 1, 2, 3
ROW_L0 = ROW_POS + S               # 7
ROWS_PER_LAYER = 8
N_VEC_ROWS = ROW_L0 + ROWS_PER_LAYER * NUM_LAYERS
CPL = 3 * E + E + FF               # 768 W_A columns per layer (all offsets multiple of 128)
CW_OUT = NUM_LAYERS * CPL          # column offset of the padded output weight
WA_COLS = CW_OUT + E


def _dot(a, b):
    return jnp.dot(a, b, preferred_element_type=jnp.float32)


def _layer_norm(x, gamma, beta):
    mu = jnp.mean(x, axis=-1, keepdims=True)
    var = jnp.mean((x - mu) ** 2, axis=-1, keepdims=True)
    return (x - mu) * lax.rsqrt(var + EPS) * gamma + beta


def transformer_kernel(x_ref, vecs_ref, wa_ref, wb_ref, out_ref, *, bt):
    M = bt * S

    # ---- input projection (F_IN == 1 -> broadcast multiply) + positional enc ----
    x = x_ref[...].reshape(M, F_IN)                       # (M, 1)
    wi = vecs_ref[ROW_WI:ROW_WI + 1, :E]                  # (1, E)
    bi = vecs_ref[ROW_BI:ROW_BI + 1, :E]
    h = x * wi + bi                                       # (M, E)
    pos = vecs_ref[ROW_POS:ROW_POS + S, :E]               # (S, E)
    h = (h.reshape(bt, S, E) + pos[None, :, :]).reshape(M, E)

    for l in range(NUM_LAYERS):
        r0 = ROW_L0 + l * ROWS_PER_LAYER
        c0 = l * CPL
        wqkv = wa_ref[:, c0:c0 + 3 * E]                   # (E, 3E)  Q cols pre-scaled
        wo = wa_ref[:, c0 + 3 * E:c0 + 4 * E]             # (E, E)
        w1 = wa_ref[:, c0 + 4 * E:c0 + 4 * E + FF]        # (E, FF)
        w2 = wb_ref[l * FF:(l + 1) * FF, :]               # (FF, E)
        bqkv = vecs_ref[r0 + 0:r0 + 1, :]                 # (1, 3E)  Q part pre-scaled
        bo = vecs_ref[r0 + 1:r0 + 2, :E]
        b1 = vecs_ref[r0 + 2:r0 + 3, :FF]
        b2 = vecs_ref[r0 + 3:r0 + 4, :E]
        g1 = vecs_ref[r0 + 4:r0 + 5, :E]
        be1 = vecs_ref[r0 + 5:r0 + 6, :E]
        g2 = vecs_ref[r0 + 6:r0 + 7, :E]
        be2 = vecs_ref[r0 + 7:r0 + 8, :E]

        # ---- multi-head self attention (post-norm encoder layer) ----
        qkv = _dot(h, wqkv) + bqkv                        # (M, 3E)
        q3 = qkv[:, 0:E].reshape(bt, S, E)
        k3 = qkv[:, E:2 * E].reshape(bt, S, E)
        v3 = qkv[:, 2 * E:3 * E].reshape(bt, S, E)

        ctx_heads = []
        for hh in range(H):                               # heads unrolled, batched over B
            lo, hi = hh * DH, (hh + 1) * DH
            qh, kh, vh = q3[:, :, lo:hi], k3[:, :, lo:hi], v3[:, :, lo:hi]
            s = jnp.einsum('bqd,bkd->bqk', qh, kh,
                           preferred_element_type=jnp.float32)      # (bt, S, S)
            m = jnp.max(s, axis=-1, keepdims=True)
            e = jnp.exp(s - m)
            p = e * pl.reciprocal(jnp.sum(e, axis=-1, keepdims=True), approx=True)
            ctx_heads.append(jnp.einsum('bqk,bkd->bqd', p, vh,
                                        preferred_element_type=jnp.float32))
        ctx = jnp.concatenate(ctx_heads, axis=-1).reshape(M, E)      # (M, E)

        attn = _dot(ctx, wo) + bo
        h = _layer_norm(h + attn, g1, be1)

        # ---- feed forward (E -> 2E -> E, ReLU) ----
        ff = jnp.maximum(_dot(h, w1) + b1, 0.0)
        ff = _dot(ff, w2) + b2
        h = _layer_norm(h + ff, g2, be2)

    # ---- mean pool over seq + lane-dense (E-wide, zero-padded) output proj ----
    pooled = jnp.mean(h.reshape(bt, S, E), axis=1)        # (bt, E)
    wout = wa_ref[:, CW_OUT:CW_OUT + E]                   # (E, E), cols >= OUT are zero
    bout = vecs_ref[ROW_BOUT:ROW_BOUT + 1, :E]
    out_ref[...] = _dot(pooled, wout) + bout              # (bt, E)


def rotation_transformer_forward(x, packed, *, batch_tile=None):
    vecs, wa, wb = packed
    bx = x.shape[0]
    bt = batch_tile if batch_tile is not None else bx
    assert bx % bt == 0 and (bt == bx or bt % 8 == 0), \
        "batch tile must equal B or be a multiple of 8"
    grid = (bx // bt,)

    out_padded = pl.pallas_call(
        partial(transformer_kernel, bt=bt),
        out_shape=jax.ShapeDtypeStruct((bx, E), jnp.float32),
        grid=grid,
        in_specs=[
            pl.BlockSpec((bt, S, F_IN), lambda i: (i, 0, 0)),      # activations: batch-tiled
            pl.BlockSpec((N_VEC_ROWS, VW), lambda i: (0, 0)),      # all bias/LN/pos rows
            pl.BlockSpec((E, WA_COLS), lambda i: (0, 0)),          # all (E, .) weights
            pl.BlockSpec((NUM_LAYERS * FF, E), lambda i: (0, 0)),  # all (FF, E) weights
        ],
        out_specs=pl.BlockSpec((bt, E), lambda i: (i, 0)),         # lane-dense padded output
        compiler_params=pltpu.CompilerParams(
            dimension_semantics=("parallel",)),                    # shard batch tiles over TCs
    )(x, vecs, wa, wb)
    return out_padded[:, :OUT]


# ---- parameter construction / packing (host-side glue, runs once) ----------
def init_params(key):
    ks = jax.random.split(key, 5 + NUM_LAYERS)

    def w(k, shape, scale=0.05):
        return scale * jax.random.normal(k, shape, dtype=jnp.float32)

    p = {
        "wi": w(ks[0], (E, F_IN)),                       # input_proj.weight  (E, F_IN)
        "bi": w(ks[1], (E,), 0.02),                      # input_proj.bias
        "pos": 0.1 * jax.random.normal(ks[2], (1, S, E), dtype=jnp.float32),
        "wout": w(ks[3], (OUT, E)),                      # output_layer.weight
        "bout": w(ks[4], (OUT,), 0.02),
        "layers": [],
    }
    for l in range(NUM_LAYERS):
        lk = jax.random.split(ks[5 + l], 8)
        p["layers"].append(dict(
            in_proj_weight=w(lk[0], (3 * E, E)),
            in_proj_bias=w(lk[1], (3 * E,), 0.02),
            out_proj_weight=w(lk[2], (E, E)),
            out_proj_bias=w(lk[3], (E,), 0.02),
            w1=w(lk[4], (FF, E)),
            b1=w(lk[5], (FF,), 0.02),
            w2=w(lk[6], (E, FF)),
            b2=w(lk[7], (E,), 0.02),
            ln1_g=jnp.ones((E,), jnp.float32),
            ln1_b=jnp.zeros((E,), jnp.float32),
            ln2_g=jnp.ones((E,), jnp.float32),
            ln2_b=jnp.zeros((E,), jnp.float32),
        ))
    return p


def pack_params(p):
    """Pack all parameters into 3 slabs; fold 1/sqrt(DH) into Wq / bq."""
    scale = 1.0 / math.sqrt(DH)
    vecs = jnp.zeros((N_VEC_ROWS, VW), jnp.float32)
    vecs = vecs.at[ROW_WI, :E].set(p["wi"][:, 0])
    vecs = vecs.at[ROW_BI, :E].set(p["bi"])
    vecs = vecs.at[ROW_BOUT, :OUT].set(p["bout"])
    vecs = vecs.at[ROW_POS:ROW_POS + S, :E].set(p["pos"].reshape(S, E))

    wa = jnp.zeros((E, WA_COLS), jnp.float32)
    wb = jnp.zeros((NUM_LAYERS * FF, E), jnp.float32)
    for l, lp in enumerate(p["layers"]):
        r0 = ROW_L0 + l * ROWS_PER_LAYER
        in_b = lp["in_proj_bias"].at[:E].multiply(scale)          # fold scale into bq
        vecs = vecs.at[r0 + 0, :3 * E].set(in_b)
        vecs = vecs.at[r0 + 1, :E].set(lp["out_proj_bias"])
        vecs = vecs.at[r0 + 2, :FF].set(lp["b1"])
        vecs = vecs.at[r0 + 3, :E].set(lp["b2"])
        vecs = vecs.at[r0 + 4, :E].set(lp["ln1_g"])
        vecs = vecs.at[r0 + 5, :E].set(lp["ln1_b"])
        vecs = vecs.at[r0 + 6, :E].set(lp["ln2_g"])
        vecs = vecs.at[r0 + 7, :E].set(lp["ln2_b"])

        c0 = l * CPL
        wqkv_t = lp["in_proj_weight"].T.at[:, :E].multiply(scale)  # fold scale into Wq cols
        wa = wa.at[:, c0:c0 + 3 * E].set(wqkv_t)
        wa = wa.at[:, c0 + 3 * E:c0 + 4 * E].set(lp["out_proj_weight"].T)
        wa = wa.at[:, c0 + 4 * E:c0 + 4 * E + FF].set(lp["w1"].T)
        wb = wb.at[l * FF:(l + 1) * FF, :].set(lp["w2"].T)
    wa = wa.at[:, CW_OUT:CW_OUT + OUT].set(p["wout"].T)            # padded output weight
    return vecs, wa, wb


# ---- pure-JAX reference (outside Pallas) for a sanity check -----------------
def reference_forward(x, p):
    scale = 1.0 / math.sqrt(DH)
    b = x.shape[0]
    h = x @ p["wi"].T + p["bi"]
    h = h + p["pos"]
    for lp in p["layers"]:
        qkv = h @ lp["in_proj_weight"].T + lp["in_proj_bias"]
        q, k, v = qkv[..., :E], qkv[..., E:2 * E], qkv[..., 2 * E:]

        def split(t):
            return t.reshape(b, S, H, DH).transpose(0, 2, 1, 3)    # (B, H, S, DH)

        qh, kh, vh = split(q), split(k), split(v)
        s = jnp.einsum('bhqd,bhkd->bhqk', qh, kh) * scale
        pr = jax.nn.softmax(s, axis=-1)
        ctx = jnp.einsum('bhqk,bhkd->bhqd', pr, vh)
        ctx = ctx.transpose(0, 2, 1, 3).reshape(b, S, E)
        attn = ctx @ lp["out_proj_weight"].T + lp["out_proj_bias"]
        h = _layer_norm(h + attn, lp["ln1_g"], lp["ln1_b"])
        ff = jax.nn.relu(h @ lp["w1"].T + lp["b1"]) @ lp["w2"].T + lp["b2"]
        h = _layer_norm(h + ff, lp["ln2_g"], lp["ln2_b"])
    pooled = jnp.mean(h, axis=1)
    return pooled @ p["wout"].T + p["bout"]


if __name__ == "__main__":
    key = jax.random.PRNGKey(0)
    kx, kp = jax.random.split(key)
    x = jax.random.normal(kx, (B, S, F_IN), dtype=jnp.float32)
    params = init_params(kp)
    packed = pack_params(params)

    out = rotation_transformer_forward(x, packed)
    out = jax.block_until_ready(out)
    assert out.shape == (B, OUT) and out.dtype == jnp.float32
    assert bool(jnp.all(jnp.isfinite(out)))

    with jax.default_matmul_precision("float32"):
        ref = jax.block_until_ready(reference_forward(x, params))
    err = float(jnp.max(jnp.abs(out - ref)))
    assert err < 5e-2, f"kernel/reference mismatch: max abs err = {err}"

    print("KERNEL_OK")
</pallas_src>

<mosaic_0001>
module attributes {stable_mosaic.version = 11 : i64} {
  func.func @transformer_kernel(%arg0: i32, %arg1: memref<2x4x1xf32, #tpu.memory_space<vmem>>, %arg2: memref<23x384xf32, #tpu.memory_space<vmem>>, %arg3: memref<128x1664xf32, #tpu.memory_space<vmem>>, %arg4: memref<512x128xf32, #tpu.memory_space<vmem>>, %arg5: memref<2x128xf32, #tpu.memory_space<vmem>>) attributes {dimension_semantics = [#tpu.dimension_semantics<parallel>], iteration_bounds = array<i64: 1>, scalar_prefetch = 0 : i64, scratch_operands = 0 : i64, tpu.core_type = #tpu.core_type<tc>, window_params = [{transform_indices = @transform_0, window_bounds = array<i64: 2, 4, 1>}, {pipeline_mode = #tpu.pipeline_mode<synchronous>, transform_indices = @transform_1, window_bounds = array<i64: 23, 384>}, {pipeline_mode = #tpu.pipeline_mode<synchronous>, transform_indices = @transform_2, window_bounds = array<i64: 128, 1664>}, {pipeline_mode = #tpu.pipeline_mode<synchronous>, transform_indices = @transform_3, window_bounds = array<i64: 512, 128>}, {transform_indices = @transform_4, window_bounds = array<i64: 2, 128>}]} {
    %c0 = arith.constant 0 : index
    %c0_0 = arith.constant 0 : index
    %c0_1 = arith.constant 0 : index
    %0 = vector.load %arg1[%c0, %c0_0, %c0_1] : memref<2x4x1xf32, #tpu.memory_space<vmem>>, vector<2x4x1xf32>
    %1 = vector.shape_cast %0 : vector<2x4x1xf32> to vector<8x1xf32>
    %c0_2 = arith.constant 0 : index
    %c0_3 = arith.constant 0 : index
    %2 = vector.load %arg2[%c0_2, %c0_3] : memref<23x384xf32, #tpu.memory_space<vmem>>, vector<1x128xf32>
    %c1 = arith.constant 1 : index
    %c0_4 = arith.constant 0 : index
    %3 = vector.load %arg2[%c1, %c0_4] : memref<23x384xf32, #tpu.memory_space<vmem>>, vector<1x128xf32>
    %4 = vector.broadcast %1 : vector<8x1xf32> to vector<8x128xf32>
    %5 = vector.broadcast %2 : vector<1x128xf32> to vector<8x128xf32>
    %6 = arith.mulf %4, %5 : vector<8x128xf32>
    %7 = vector.broadcast %3 : vector<1x128xf32> to vector<8x128xf32>
    %8 = arith.addf %6, %7 : vector<8x128xf32>
    %c3 = arith.constant 3 : index
    %c0_5 = arith.constant 0 : index
    %9 = vector.load %arg2[%c3, %c0_5] : memref<23x384xf32, #tpu.memory_space<vmem>>, vector<4x128xf32>
    %10 = vector.shape_cast %8 : vector<8x128xf32> to vector<2x4x128xf32>
    %11 = vector.shape_cast %9 : vector<4x128xf32> to vector<1x4x128xf32>
    %12 = vector.broadcast %11 : vector<1x4x128xf32> to vector<2x4x128xf32>
    %13 = arith.addf %10, %12 : vector<2x4x128xf32>
    %14 = vector.shape_cast %13 : vector<2x4x128xf32> to vector<8x128xf32>
    %c0_6 = arith.constant 0 : index
    %c0_7 = arith.constant 0 : index
    %15 = vector.load %arg3[%c0_6, %c0_7] : memref<128x1664xf32, #tpu.memory_space<vmem>>, vector<128x384xf32>
    %c0_8 = arith.constant 0 : index
    %c384 = arith.constant 384 : index
    %16 = vector.load %arg3[%c0_8, %c384] : memref<128x1664xf32, #tpu.memory_space<vmem>>, vector<128x128xf32>
    %c0_9 = arith.constant 0 : index
    %c512 = arith.constant 512 : index
    %17 = vector.load %arg3[%c0_9, %c512] : memref<128x1664xf32, #tpu.memory_space<vmem>>, vector<128x256xf32>
    %c0_10 = arith.constant 0 : index
    %c0_11 = arith.constant 0 : index
    %18 = vector.load %arg4[%c0_10, %c0_11] : memref<512x128xf32, #tpu.memory_space<vmem>>, vector<256x128xf32>
    %c7 = arith.constant 7 : index
    %c0_12 = arith.constant 0 : index
    %19 = vector.load %arg2[%c7, %c0_12] : memref<23x384xf32, #tpu.memory_space<vmem>>, vector<1x384xf32>
    %c8 = arith.constant 8 : index
    %c0_13 = arith.constant 0 : index
    %20 = vector.load %arg2[%c8, %c0_13] : memref<23x384xf32, #tpu.memory_space<vmem>>, vector<1x128xf32>
    %c9 = arith.constant 9 : index
    %c0_14 = arith.constant 0 : index
    %21 = vector.load %arg2[%c9, %c0_14] : memref<23x384xf32, #tpu.memory_space<vmem>>, vector<1x256xf32>
    %c10 = arith.constant 10 : index
    %c0_15 = arith.constant 0 : index
    %22 = vector.load %arg2[%c10, %c0_15] : memref<23x384xf32, #tpu.memory_space<vmem>>, vector<1x128xf32>
    %c11 = arith.constant 11 : index
    %c0_16 = arith.constant 0 : index
    %23 = vector.load %arg2[%c11, %c0_16] : memref<23x384xf32, #tpu.memory_space<vmem>>, vector<1x128xf32>
    %c12 = arith.constant 12 : index
    %c0_17 = arith.constant 0 : index
    %24 = vector.load %arg2[%c12, %c0_17] : memref<23x384xf32, #tpu.memory_space<vmem>>, vector<1x128xf32>
    %c13 = arith.constant 13 : index
    %c0_18 = arith.constant 0 : index
    %25 = vector.load %arg2[%c13, %c0_18] : memref<23x384xf32, #tpu.memory_space<vmem>>, vector<1x128xf32>
    %c14 = arith.constant 14 : index
    %c0_19 = arith.constant 0 : index
    %26 = vector.load %arg2[%c14, %c0_19] : memref<23x384xf32, #tpu.memory_space<vmem>>, vector<1x128xf32>
    %cst = arith.constant dense<0.000000e+00> : vector<8x384xf32>
    %27 = tpu.matmul %14, %15, %cst {dimension_numbers = #tpu.dot_dimension_numbers<[1], [0], [0], [1], [0, 0, 1, 1], [], []>} : vector<8x128xf32>, vector<128x384xf32>, vector<8x384xf32> -> vector<8x384xf32>
    %28 = vector.broadcast %19 : vector<1x384xf32> to vector<8x384xf32>
    %29 = arith.addf %27, %28 : vector<8x384xf32>
    %30 = vector.extract_strided_slice %29 {offsets = [0, 0], sizes = [8, 128], strides = [1, 1]} : vector<8x384xf32> to vector<8x128xf32>
    %31 = vector.shape_cast %30 : vector<8x128xf32> to vector<2x4x128xf32>
    %32 = vector.extract_strided_slice %29 {offsets = [0, 128], sizes = [8, 128], strides = [1, 1]} : vector<8x384xf32> to vector<8x128xf32>
    %33 = vector.shape_cast %32 : vector<8x128xf32> to vector<2x4x128xf32>
    %34 = vector.extract_strided_slice %29 {offsets = [0, 256], sizes = [8, 128], strides = [1, 1]} : vector<8x384xf32> to vector<8x128xf32>
    %35 = vector.shape_cast %34 : vector<8x128xf32> to vector<2x4x128xf32>
    %36 = vector.extract_strided_slice %31 {offsets = [0, 0, 0], sizes = [2, 4, 32], strides = [1, 1, 1]} : vector<2x4x128xf32> to vector<2x4x32xf32>
    %37 = vector.extract_strided_slice %33 {offsets = [0, 0, 0], sizes = [2, 4, 32], strides = [1, 1, 1]} : vector<2x4x128xf32> to vector<2x4x32xf32>
    %38 = vector.extract_strided_slice %35 {offsets = [0, 0, 0], sizes = [2, 4, 32], strides = [1, 1, 1]} : vector<2x4x128xf32> to vector<2x4x32xf32>
    "tpu.trace_start"() <{level = 10 : i32, message = "bqd,bkd->bqk"}> : () -> ()
    %cst_20 = arith.constant dense<0.000000e+00> : vector<2x4x4xf32>
    %39 = tpu.matmul %36, %37, %cst_20 {dimension_numbers = #tpu.dot_dimension_numbers<[2], [2], [1], [1], [0, 0, 0, 1, 1, 1], [0], [0]>} : vector<2x4x32xf32>, vector<2x4x32xf32>, vector<2x4x4xf32> -> vector<2x4x4xf32>
    "tpu.trace_stop"() : () -> ()
    %cst_21 = arith.constant dense<0xFF800000> : vector<2x4xf32>
    %40 = vector.multi_reduction <maximumf>, %39, %cst_21 [2] : vector<2x4x4xf32> to vector<2x4xf32>
    %41 = vector.shape_cast %40 : vector<2x4xf32> to vector<2x4x1xf32>
    %42 = vector.broadcast %41 : vector<2x4x1xf32> to vector<2x4x4xf32>
    %43 = arith.subf %39, %42 : vector<2x4x4xf32>
    %44 = math.exp %43 : vector<2x4x4xf32>
    %cst_22 = arith.constant dense<0.000000e+00> : vector<2x4xf32>
    %45 = vector.multi_reduction <add>, %44, %cst_22 [2] : vector<2x4x4xf32> to vector<2x4xf32>
    %46 = vector.shape_cast %45 : vector<2x4xf32> to vector<2x4x1xf32>
    %47 = tpu.reciprocal %46 {approx = true} : vector<2x4x1xf32> -> vector<2x4x1xf32>
    %48 = vector.broadcast %47 : vector<2x4x1xf32> to vector<2x4x4xf32>
    %49 = arith.mulf %44, %48 : vector<2x4x4xf32>
    "tpu.trace_start"() <{level = 10 : i32, message = "bqk,bkd->bqd"}> : () -> ()
    %cst_23 = arith.constant dense<0.000000e+00> : vector<2x4x32xf32>
    %50 = tpu.matmul %49, %38, %cst_23 {dimension_numbers = #tpu.dot_dimension_numbers<[2], [1], [1], [2], [0, 0, 0, 1, 1, 2], [0], [0]>} : vector<2x4x4xf32>, vector<2x4x32xf32>, vector<2x4x32xf32> -> vector<2x4x32xf32>
    "tpu.trace_stop"() : () -> ()
    %51 = vector.extract_strided_slice %31 {offsets = [0, 0, 32], sizes = [2, 4, 32], strides = [1, 1, 1]} : vector<2x4x128xf32> to vector<2x4x32xf32>
    %52 = vector.extract_strided_slice %33 {offsets = [0, 0, 32], sizes = [2, 4, 32], strides = [1, 1, 1]} : vector<2x4x128xf32> to vector<2x4x32xf32>
    %53 = vector.extract_strided_slice %35 {offsets = [0, 0, 32], sizes = [2, 4, 32], strides = [1, 1, 1]} : vector<2x4x128xf32> to vector<2x4x32xf32>
    "tpu.trace_start"() <{level = 10 : i32, message = "bqd,bkd->bqk"}> : () -> ()
    %cst_24 = arith.constant dense<0.000000e+00> : vector<2x4x4xf32>
    %54 = tpu.matmul %51, %52, %cst_24 {dimension_numbers = #tpu.dot_dimension_numbers<[2], [2], [1], [1], [0, 0, 0, 1, 1, 1], [0], [0]>} : vector<2x4x32xf32>, vector<2x4x32xf32>, vector<2x4x4xf32> -> vector<2x4x4xf32>
    "tpu.trace_stop"() : () -> ()
    %cst_25 = arith.constant dense<0xFF800000> : vector<2x4xf32>
    %55 = vector.multi_reduction <maximumf>, %54, %cst_25 [2] : vector<2x4x4xf32> to vector<2x4xf32>
    %56 = vector.shape_cast %55 : vector<2x4xf32> to vector<2x4x1xf32>
    %57 = vector.broadcast %56 : vector<2x4x1xf32> to vector<2x4x4xf32>
    %58 = arith.subf %54, %57 : vector<2x4x4xf32>
    %59 = math.exp %58 : vector<2x4x4xf32>
    %cst_26 = arith.constant dense<0.000000e+00> : vector<2x4xf32>
    %60 = vector.multi_reduction <add>, %59, %cst_26 [2] : vector<2x4x4xf32> to vector<2x4xf32>
    %61 = vector.shape_cast %60 : vector<2x4xf32> to vector<2x4x1xf32>
    %62 = tpu.reciprocal %61 {approx = true} : vector<2x4x1xf32> -> vector<2x4x1xf32>
    %63 = vector.broadcast %62 : vector<2x4x1xf32> to vector<2x4x4xf32>
    %64 = arith.mulf %59, %63 : vector<2x4x4xf32>
    "tpu.trace_start"() <{level = 10 : i32, message = "bqk,bkd->bqd"}> : () -> ()
    %cst_27 = arith.constant dense<0.000000e+00> : vector<2x4x32xf32>
    %65 = tpu.matmul %64, %53, %cst_27 {dimension_numbers = #tpu.dot_dimension_numbers<[2], [1], [1], [2], [0, 0, 0, 1, 1, 2], [0], [0]>} : vector<2x4x4xf32>, vector<2x4x32xf32>, vector<2x4x32xf32> -> vector<2x4x32xf32>
    "tpu.trace_stop"() : () -> ()
    %66 = vector.extract_strided_slice %31 {offsets = [0, 0, 64], sizes = [2, 4, 32], strides = [1, 1, 1]} : vector<2x4x128xf32> to vector<2x4x32xf32>
    %67 = vector.extract_strided_slice %33 {offsets = [0, 0, 64], sizes = [2, 4, 32], strides = [1, 1, 1]} : vector<2x4x128xf32> to vector<2x4x32xf32>
    %68 = vector.extract_strided_slice %35 {offsets = [0, 0, 64], sizes = [2, 4, 32], strides = [1, 1, 1]} : vector<2x4x128xf32> to vector<2x4x32xf32>
    "tpu.trace_start"() <{level = 10 : i32, message = "bqd,bkd->bqk"}> : () -> ()
    %cst_28 = arith.constant dense<0.000000e+00> : vector<2x4x4xf32>
    %69 = tpu.matmul %66, %67, %cst_28 {dimension_numbers = #tpu.dot_dimension_numbers<[2], [2], [1], [1], [0, 0, 0, 1, 1, 1], [0], [0]>} : vector<2x4x32xf32>, vector<2x4x32xf32>, vector<2x4x4xf32> -> vector<2x4x4xf32>
    "tpu.trace_stop"() : () -> ()
    %cst_29 = arith.constant dense<0xFF800000> : vector<2x4xf32>
    %70 = vector.multi_reduction <maximumf>, %69, %cst_29 [2] : vector<2x4x4xf32> to vector<2x4xf32>
    %71 = vector.shape_cast %70 : vector<2x4xf32> to vector<2x4x1xf32>
    %72 = vector.broadcast %71 : vector<2x4x1xf32> to vector<2x4x4xf32>
    %73 = arith.subf %69, %72 : vector<2x4x4xf32>
    %74 = math.exp %73 : vector<2x4x4xf32>
    %cst_30 = arith.constant dense<0.000000e+00> : vector<2x4xf32>
    %75 = vector.multi_reduction <add>, %74, %cst_30 [2] : vector<2x4x4xf32> to vector<2x4xf32>
    %76 = vector.shape_cast %75 : vector<2x4xf32> to vector<2x4x1xf32>
    %77 = tpu.reciprocal %76 {approx = true} : vector<2x4x1xf32> -> vector<2x4x1xf32>
    %78 = vector.broadcast %77 : vector<2x4x1xf32> to vector<2x4x4xf32>
    %79 = arith.mulf %74, %78 : vector<2x4x4xf32>
    "tpu.trace_start"() <{level = 10 : i32, message = "bqk,bkd->bqd"}> : () -> ()
    %cst_31 = arith.constant dense<0.000000e+00> : vector<2x4x32xf32>
    %80 = tpu.matmul %79, %68, %cst_31 {dimension_numbers = #tpu.dot_dimension_numbers<[2], [1], [1], [2], [0, 0, 0, 1, 1, 2], [0], [0]>} : vector<2x4x4xf32>, vector<2x4x32xf32>, vector<2x4x32xf32> -> vector<2x4x32xf32>
    "tpu.trace_stop"() : () -> ()
    %81 = vector.extract_strided_slice %31 {offsets = [0, 0, 96], sizes = [2, 4, 32], strides = [1, 1, 1]} : vector<2x4x128xf32> to vector<2x4x32xf32>
    %82 = vector.extract_strided_slice %33 {offsets = [0, 0, 96], sizes = [2, 4, 32], strides = [1, 1, 1]} : vector<2x4x128xf32> to vector<2x4x32xf32>
    %83 = vector.extract_strided_slice %35 {offsets = [0, 0, 96], sizes = [2, 4, 32], strides = [1, 1, 1]} : vector<2x4x128xf32> to vector<2x4x32xf32>
    "tpu.trace_start"() <{level = 10 : i32, message = "bqd,bkd->bqk"}> : () -> ()
    %cst_32 = arith.constant dense<0.000000e+00> : vector<2x4x4xf32>
    %84 = tpu.matmul %81, %82, %cst_32 {dimension_numbers = #tpu.dot_dimension_numbers<[2], [2], [1], [1], [0, 0, 0, 1, 1, 1], [0], [0]>} : vector<2x4x32xf32>, vector<2x4x32xf32>, vector<2x4x4xf32> -> vector<2x4x4xf32>
    "tpu.trace_stop"() : () -> ()
    %cst_33 = arith.constant dense<0xFF800000> : vector<2x4xf32>
    %85 = vector.multi_reduction <maximumf>, %84, %cst_33 [2] : vector<2x4x4xf32> to vector<2x4xf32>
    %86 = vector.shape_cast %85 : vector<2x4xf32> to vector<2x4x1xf32>
    %87 = vector.broadcast %86 : vector<2x4x1xf32> to vector<2x4x4xf32>
    %88 = arith.subf %84, %87 : vector<2x4x4xf32>
    %89 = math.exp %88 : vector<2x4x4xf32>
    %cst_34 = arith.constant dense<0.000000e+00> : vector<2x4xf32>
    %90 = vector.multi_reduction <add>, %89, %cst_34 [2] : vector<2x4x4xf32> to vector<2x4xf32>
    %91 = vector.shape_cast %90 : vector<2x4xf32> to vector<2x4x1xf32>
    %92 = tpu.reciprocal %91 {approx = true} : vector<2x4x1xf32> -> vector<2x4x1xf32>
    %93 = vector.broadcast %92 : vector<2x4x1xf32> to vector<2x4x4xf32>
    %94 = arith.mulf %89, %93 : vector<2x4x4xf32>
    "tpu.trace_start"() <{level = 10 : i32, message = "bqk,bkd->bqd"}> : () -> ()
    %cst_35 = arith.constant dense<0.000000e+00> : vector<2x4x32xf32>
    %95 = tpu.matmul %94, %83, %cst_35 {dimension_numbers = #tpu.dot_dimension_numbers<[2], [1], [1], [2], [0, 0, 0, 1, 1, 2], [0], [0]>} : vector<2x4x4xf32>, vector<2x4x32xf32>, vector<2x4x32xf32> -> vector<2x4x32xf32>
    "tpu.trace_stop"() : () -> ()
    %96 = tpu.concatenate %50, %65, %80, %95 in 2 : vector<2x4x32xf32>, vector<2x4x32xf32>, vector<2x4x32xf32>, vector<2x4x32xf32> -> vector<2x4x128xf32>
    %97 = vector.shape_cast %96 : vector<2x4x128xf32> to vector<8x128xf32>
    %cst_36 = arith.constant dense<0.000000e+00> : vector<8x128xf32>
    %98 = tpu.matmul %97, %16, %cst_36 {dimension_numbers = #tpu.dot_dimension_numbers<[1], [0], [0], [1], [0, 0, 1, 1], [], []>} : vector<8x128xf32>, vector<128x128xf32>, vector<8x128xf32> -> vector<8x128xf32>
    %99 = vector.broadcast %20 : vector<1x128xf32> to vector<8x128xf32>
    %100 = arith.addf %98, %99 : vector<8x128xf32>
    %101 = arith.addf %14, %100 : vector<8x128xf32>
    %cst_37 = arith.constant dense<0.000000e+00> : vector<8xf32>
    %102 = vector.multi_reduction <add>, %101, %cst_37 [1] : vector<8x128xf32> to vector<8xf32>
    %103 = vector.shape_cast %102 : vector<8xf32> to vector<8x1xf32>
    %cst_38 = arith.constant 1.280000e+02 : f32
    %104 = vector.broadcast %cst_38 : f32 to vector<8x1xf32>
    %105 = arith.divf %103, %104 : vector<8x1xf32>
    %106 = vector.broadcast %105 : vector<8x1xf32> to vector<8x128xf32>
    %107 = arith.subf %101, %106 : vector<8x128xf32>
    %108 = arith.mulf %107, %107 : vector<8x128xf32>
    %cst_39 = arith.constant dense<0.000000e+00> : vector<8xf32>
    %109 = vector.multi_reduction <add>, %108, %cst_39 [1] : vector<8x128xf32> to vector<8xf32>
    %110 = vector.shape_cast %109 : vector<8xf32> to vector<8x1xf32>
    %cst_40 = arith.constant 1.280000e+02 : f32
    %111 = vector.broadcast %cst_40 : f32 to vector<8x1xf32>
    %112 = arith.divf %110, %111 : vector<8x1xf32>
    %113 = vector.broadcast %105 : vector<8x1xf32> to vector<8x128xf32>
    %114 = arith.subf %101, %113 : vector<8x128xf32>
    %cst_41 = arith.constant 9.99999974E-6 : f32
    %115 = vector.broadcast %cst_41 : f32 to vector<8x1xf32>
    %116 = arith.addf %112, %115 : vector<8x1xf32>
    %117 = math.rsqrt %116 : vector<8x1xf32>
    %118 = vector.broadcast %117 : vector<8x1xf32> to vector<8x128xf32>
    %119 = arith.mulf %114, %118 : vector<8x128xf32>
    %120 = vector.broadcast %23 : vector<1x128xf32> to vector<8x128xf32>
    %121 = arith.mulf %119, %120 : vector<8x128xf32>
    %122 = vector.broadcast %24 : vector<1x128xf32> to vector<8x128xf32>
    %123 = arith.addf %121, %122 : vector<8x128xf32>
    %cst_42 = arith.constant dense<0.000000e+00> : vector<8x256xf32>
    %124 = tpu.matmul %123, %17, %cst_42 {dimension_numbers = #tpu.dot_dimension_numbers<[1], [0], [0], [1], [0, 0, 1, 1], [], []>} : vector<8x128xf32>, vector<128x256xf32>, vector<8x256xf32> -> vector<8x256xf32>
    %125 = vector.broadcast %21 : vector<1x256xf32> to vector<8x256xf32>
    %126 = arith.addf %124, %125 : vector<8x256xf32>
    %cst_43 = arith.constant 0.000000e+00 : f32
    %127 = vector.broadcast %cst_43 : f32 to vector<8x256xf32>
    %128 = arith.maximumf %126, %127 : vector<8x256xf32>
    %cst_44 = arith.constant dense<0.000000e+00> : vector<8x128xf32>
    %129 = tpu.matmul %128, %18, %cst_44 {dimension_numbers = #tpu.dot_dimension_numbers<[1], [0], [0], [1], [0, 0, 1, 1], [], []>} : vector<8x256xf32>, vector<256x128xf32>, vector<8x128xf32> -> vector<8x128xf32>
    %130 = vector.broadcast %22 : vector<1x128xf32> to vector<8x128xf32>
    %131 = arith.addf %129, %130 : vector<8x128xf32>
    %132 = arith.addf %123, %131 : vector<8x128xf32>
    %cst_45 = arith.constant dense<0.000000e+00> : vector<8xf32>
    %133 = vector.multi_reduction <add>, %132, %cst_45 [1] : vector<8x128xf32> to vector<8xf32>
    %134 = vector.shape_cast %133 : vector<8xf32> to vector<8x1xf32>
    %cst_46 = arith.constant 1.280000e+02 : f32
    %135 = vector.broadcast %cst_46 : f32 to vector<8x1xf32>
    %136 = arith.divf %134, %135 : vector<8x1xf32>
    %137 = vector.broadcast %136 : vector<8x1xf32> to vector<8x128xf32>
    %138 = arith.subf %132, %137 : vector<8x128xf32>
    %139 = arith.mulf %138, %138 : vector<8x128xf32>
    %cst_47 = arith.constant dense<0.000000e+00> : vector<8xf32>
    %140 = vector.multi_reduction <add>, %139, %cst_47 [1] : vector<8x128xf32> to vector<8xf32>
    %141 = vector.shape_cast %140 : vector<8xf32> to vector<8x1xf32>
    %cst_48 = arith.constant 1.280000e+02 : f32
    %142 = vector.broadcast %cst_48 : f32 to vector<8x1xf32>
    %143 = arith.divf %141, %142 : vector<8x1xf32>
    %144 = vector.broadcast %136 : vector<8x1xf32> to vector<8x128xf32>
    %145 = arith.subf %132, %144 : vector<8x128xf32>
    %cst_49 = arith.constant 9.99999974E-6 : f32
    %146 = vector.broadcast %cst_49 : f32 to vector<8x1xf32>
    %147 = arith.addf %143, %146 : vector<8x1xf32>
    %148 = math.rsqrt %147 : vector<8x1xf32>
    %149 = vector.broadcast %148 : vector<8x1xf32> to vector<8x128xf32>
    %150 = arith.mulf %145, %149 : vector<8x128xf32>
    %151 = vector.broadcast %25 : vector<1x128xf32> to vector<8x128xf32>
    %152 = arith.mulf %150, %151 : vector<8x128xf32>
    %153 = vector.broadcast %26 : vector<1x128xf32> to vector<8x128xf32>
    %154 = arith.addf %152, %153 : vector<8x128xf32>
    %c0_50 = arith.constant 0 : index
    %c768 = arith.constant 768 : index
    %155 = vector.load %arg3[%c0_50, %c768] : memref<128x1664xf32, #tpu.memory_space<vmem>>, vector<128x384xf32>
    %c0_51 = arith.constant 0 : index
    %c1152 = arith.constant 1152 : index
    %156 = vector.load %arg3[%c0_51, %c1152] : memref<128x1664xf32, #tpu.memory_space<vmem>>, vector<128x128xf32>
    %c0_52 = arith.constant 0 : index
    %c1280 = arith.constant 1280 : index
    %157 = vector.load %arg3[%c0_52, %c1280] : memref<128x1664xf32, #tpu.memory_space<vmem>>, vector<128x256xf32>
    %c256 = arith.constant 256 : index
    %c0_53 = arith.constant 0 : index
    %158 = vector.load %arg4[%c256, %c0_53] : memref<512x128xf32, #tpu.memory_space<vmem>>, vector<256x128xf32>
    %c15 = arith.constant 15 : index
    %c0_54 = arith.constant 0 : index
    %159 = vector.load %arg2[%c15, %c0_54] : memref<23x384xf32, #tpu.memory_space<vmem>>, vector<1x384xf32>
    %c16 = arith.constant 16 : index
    %c0_55 = arith.constant 0 : index
    %160 = vector.load %arg2[%c16, %c0_55] : memref<23x384xf32, #tpu.memory_space<vmem>>, vector<1x128xf32>
    %c17 = arith.constant 17 : index
    %c0_56 = arith.constant 0 : index
    %161 = vector.load %arg2[%c17, %c0_56] : memref<23x384xf32, #tpu.memory_space<vmem>>, vector<1x256xf32>
    %c18 = arith.constant 18 : index
    %c0_57 = arith.constant 0 : index
    %162 = vector.load %arg2[%c18, %c0_57] : memref<23x384xf32, #tpu.memory_space<vmem>>, vector<1x128xf32>
    %c19 = arith.constant 19 : index
    %c0_58 = arith.constant 0 : index
    %163 = vector.load %arg2[%c19, %c0_58] : memref<23x384xf32, #tpu.memory_space<vmem>>, vector<1x128xf32>
    %c20 = arith.constant 20 : index
    %c0_59 = arith.constant 0 : index
    %164 = vector.load %arg2[%c20, %c0_59] : memref<23x384xf32, #tpu.memory_space<vmem>>, vector<1x128xf32>
    %c21 = arith.constant 21 : index
    %c0_60 = arith.constant 0 : index
    %165 = vector.load %arg2[%c21, %c0_60] : memref<23x384xf32, #tpu.memory_space<vmem>>, vector<1x128xf32>
    %c22 = arith.constant 22 : index
    %c0_61 = arith.constant 0 : index
    %166 = vector.load %arg2[%c22, %c0_61] : memref<23x384xf32, #tpu.memory_space<vmem>>, vector<1x128xf32>
    %cst_62 = arith.constant dense<0.000000e+00> : vector<8x384xf32>
    %167 = tpu.matmul %154, %155, %cst_62 {dimension_numbers = #tpu.dot_dimension_numbers<[1], [0], [0], [1], [0, 0, 1, 1], [], []>} : vector<8x128xf32>, vector<128x384xf32>, vector<8x384xf32> -> vector<8x384xf32>
    %168 = vector.broadcast %159 : vector<1x384xf32> to vector<8x384xf32>
    %169 = arith.addf %167, %168 : vector<8x384xf32>
    %170 = vector.extract_strided_slice %169 {offsets = [0, 0], sizes = [8, 128], strides = [1, 1]} : vector<8x384xf32> to vector<8x128xf32>
    %171 = vector.shape_cast %170 : vector<8x128xf32> to vector<2x4x128xf32>
    %172 = vector.extract_strided_slice %169 {offsets = [0, 128], sizes = [8, 128], strides = [1, 1]} : vector<8x384xf32> to vector<8x128xf32>
    %173 = vector.shape_cast %172 : vector<8x128xf32> to vector<2x4x128xf32>
    %174 = vector.extract_strided_slice %169 {offsets = [0, 256], sizes = [8, 128], strides = [1, 1]} : vector<8x384xf32> to vector<8x128xf32>
    %175 = vector.shape_cast %174 : vector<8x128xf32> to vector<2x4x128xf32>
    %176 = vector.extract_strided_slice %171 {offsets = [0, 0, 0], sizes = [2, 4, 32], strides = [1, 1, 1]} : vector<2x4x128xf32> to vector<2x4x32xf32>
    %177 = vector.extract_strided_slice %173 {offsets = [0, 0, 0], sizes = [2, 4, 32], strides = [1, 1, 1]} : vector<2x4x128xf32> to vector<2x4x32xf32>
    %178 = vector.extract_strided_slice %175 {offsets = [0, 0, 0], sizes = [2, 4, 32], strides = [1, 1, 1]} : vector<2x4x128xf32> to vector<2x4x32xf32>
    "tpu.trace_start"() <{level = 10 : i32, message = "bqd,bkd->bqk"}> : () -> ()
    %cst_63 = arith.constant dense<0.000000e+00> : vector<2x4x4xf32>
    %179 = tpu.matmul %176, %177, %cst_63 {dimension_numbers = #tpu.dot_dimension_numbers<[2], [2], [1], [1], [0, 0, 0, 1, 1, 1], [0], [0]>} : vector<2x4x32xf32>, vector<2x4x32xf32>, vector<2x4x4xf32> -> vector<2x4x4xf32>
    "tpu.trace_stop"() : () -> ()
    %cst_64 = arith.constant dense<0xFF800000> : vector<2x4xf32>
    %180 = vector.multi_reduction <maximumf>, %179, %cst_64 [2] : vector<2x4x4xf32> to vector<2x4xf32>
    %181 = vector.shape_cast %180 : vector<2x4xf32> to vector<2x4x1xf32>
    %182 = vector.broadcast %181 : vector<2x4x1xf32> to vector<2x4x4xf32>
    %183 = arith.subf %179, %182 : vector<2x4x4xf32>
    %184 = math.exp %183 : vector<2x4x4xf32>
    %cst_65 = arith.constant dense<0.000000e+00> : vector<2x4xf32>
    %185 = vector.multi_reduction <add>, %184, %cst_65 [2] : vector<2x4x4xf32> to vector<2x4xf32>
    %186 = vector.shape_cast %185 : vector<2x4xf32> to vector<2x4x1xf32>
    %187 = tpu.reciprocal %186 {approx = true} : vector<2x4x1xf32> -> vector<2x4x1xf32>
    %188 = vector.broadcast %187 : vector<2x4x1xf32> to vector<2x4x4xf32>
    %189 = arith.mulf %184, %188 : vector<2x4x4xf32>
    "tpu.trace_start"() <{level = 10 : i32, message = "bqk,bkd->bqd"}> : () -> ()
    %cst_66 = arith.constant dense<0.000000e+00> : vector<2x4x32xf32>
    %190 = tpu.matmul %189, %178, %cst_66 {dimension_numbers = #tpu.dot_dimension_numbers<[2], [1], [1], [2], [0, 0, 0, 1, 1, 2], [0], [0]>} : vector<2x4x4xf32>, vector<2x4x32xf32>, vector<2x4x32xf32> -> vector<2x4x32xf32>
    "tpu.trace_stop"() : () -> ()
    %191 = vector.extract_strided_slice %171 {offsets = [0, 0, 32], sizes = [2, 4, 32], strides = [1, 1, 1]} : vector<2x4x128xf32> to vector<2x4x32xf32>
    %192 = vector.extract_strided_slice %173 {offsets = [0, 0, 32], sizes = [2, 4, 32], strides = [1, 1, 1]} : vector<2x4x128xf32> to vector<2x4x32xf32>
    %193 = vector.extract_strided_slice %175 {offsets = [0, 0, 32], sizes = [2, 4, 32], strides = [1, 1, 1]} : vector<2x4x128xf32> to vector<2x4x32xf32>
    "tpu.trace_start"() <{level = 10 : i32, message = "bqd,bkd->bqk"}> : () -> ()
    %cst_67 = arith.constant dense<0.000000e+00> : vector<2x4x4xf32>
    %194 = tpu.matmul %191, %192, %cst_67 {dimension_numbers = #tpu.dot_dimension_numbers<[2], [2], [1], [1], [0, 0, 0, 1, 1, 1], [0], [0]>} : vector<2x4x32xf32>, vector<2x4x32xf32>, vector<2x4x4xf32> -> vector<2x4x4xf32>
    "tpu.trace_stop"() : () -> ()
    %cst_68 = arith.constant dense<0xFF800000> : vector<2x4xf32>
    %195 = vector.multi_reduction <maximumf>, %194, %cst_68 [2] : vector<2x4x4xf32> to vector<2x4xf32>
    %196 = vector.shape_cast %195 : vector<2x4xf32> to vector<2x4x1xf32>
    %197 = vector.broadcast %196 : vector<2x4x1xf32> to vector<2x4x4xf32>
    %198 = arith.subf %194, %197 : vector<2x4x4xf32>
    %199 = math.exp %198 : vector<2x4x4xf32>
    %cst_69 = arith.constant dense<0.000000e+00> : vector<2x4xf32>
    %200 = vector.multi_reduction <add>, %199, %cst_69 [2] : vector<2x4x4xf32> to vector<2x4xf32>
    %201 = vector.shape_cast %200 : vector<2x4xf32> to vector<2x4x1xf32>
    %202 = tpu.reciprocal %201 {approx = true} : vector<2x4x1xf32> -> vector<2x4x1xf32>
    %203 = vector.broadcast %202 : vector<2x4x1xf32> to vector<2x4x4xf32>
    %204 = arith.mulf %199, %203 : vector<2x4x4xf32>
    "tpu.trace_start"() <{level = 10 : i32, message = "bqk,bkd->bqd"}> : () -> ()
    %cst_70 = arith.constant dense<0.000000e+00> : vector<2x4x32xf32>
    %205 = tpu.matmul %204, %193, %cst_70 {dimension_numbers = #tpu.dot_dimension_numbers<[2], [1], [1], [2], [0, 0, 0, 1, 1, 2], [0], [0]>} : vector<2x4x4xf32>, vector<2x4x32xf32>, vector<2x4x32xf32> -> vector<2x4x32xf32>
    "tpu.trace_stop"() : () -> ()
    %206 = vector.extract_strided_slice %171 {offsets = [0, 0, 64], sizes = [2, 4, 32], strides = [1, 1, 1]} : vector<2x4x128xf32> to vector<2x4x32xf32>
    %207 = vector.extract_strided_slice %173 {offsets = [0, 0, 64], sizes = [2, 4, 32], strides = [1, 1, 1]} : vector<2x4x128xf32> to vector<2x4x32xf32>
    %208 = vector.extract_strided_slice %175 {offsets = [0, 0, 64], sizes = [2, 4, 32], strides = [1, 1, 1]} : vector<2x4x128xf32> to vector<2x4x32xf32>
    "tpu.trace_start"() <{level = 10 : i32, message = "bqd,bkd->bqk"}> : () -> ()
    %cst_71 = arith.constant dense<0.000000e+00> : vector<2x4x4xf32>
    %209 = tpu.matmul %206, %207, %cst_71 {dimension_numbers = #tpu.dot_dimension_numbers<[2], [2], [1], [1], [0, 0, 0, 1, 1, 1], [0], [0]>} : vector<2x4x32xf32>, vector<2x4x32xf32>, vector<2x4x4xf32> -> vector<2x4x4xf32>
    "tpu.trace_stop"() : () -> ()
    %cst_72 = arith.constant dense<0xFF800000> : vector<2x4xf32>
    %210 = vector.multi_reduction <maximumf>, %209, %cst_72 [2] : vector<2x4x4xf32> to vector<2x4xf32>
    %211 = vector.shape_cast %210 : vector<2x4xf32> to vector<2x4x1xf32>
    %212 = vector.broadcast %211 : vector<2x4x1xf32> to vector<2x4x4xf32>
    %213 = arith.subf %209, %212 : vector<2x4x4xf32>
    %214 = math.exp %213 : vector<2x4x4xf32>
    %cst_73 = arith.constant dense<0.000000e+00> : vector<2x4xf32>
    %215 = vector.multi_reduction <add>, %214, %cst_73 [2] : vector<2x4x4xf32> to vector<2x4xf32>
    %216 = vector.shape_cast %215 : vector<2x4xf32> to vector<2x4x1xf32>
    %217 = tpu.reciprocal %216 {approx = true} : vector<2x4x1xf32> -> vector<2x4x1xf32>
    %218 = vector.broadcast %217 : vector<2x4x1xf32> to vector<2x4x4xf32>
    %219 = arith.mulf %214, %218 : vector<2x4x4xf32>
    "tpu.trace_start"() <{level = 10 : i32, message = "bqk,bkd->bqd"}> : () -> ()
    %cst_74 = arith.constant dense<0.000000e+00> : vector<2x4x32xf32>
    %220 = tpu.matmul %219, %208, %cst_74 {dimension_numbers = #tpu.dot_dimension_numbers<[2], [1], [1], [2], [0, 0, 0, 1, 1, 2], [0], [0]>} : vector<2x4x4xf32>, vector<2x4x32xf32>, vector<2x4x32xf32> -> vector<2x4x32xf32>
    "tpu.trace_stop"() : () -> ()
    %221 = vector.extract_strided_slice %171 {offsets = [0, 0, 96], sizes = [2, 4, 32], strides = [1, 1, 1]} : vector<2x4x128xf32> to vector<2x4x32xf32>
    %222 = vector.extract_strided_slice %173 {offsets = [0, 0, 96], sizes = [2, 4, 32], strides = [1, 1, 1]} : vector<2x4x128xf32> to vector<2x4x32xf32>
    %223 = vector.extract_strided_slice %175 {offsets = [0, 0, 96], sizes = [2, 4, 32], strides = [1, 1, 1]} : vector<2x4x128xf32> to vector<2x4x32xf32>
    "tpu.trace_start"() <{level = 10 : i32, message = "bqd,bkd->bqk"}> : () -> ()
    %cst_75 = arith.constant dense<0.000000e+00> : vector<2x4x4xf32>
    %224 = tpu.matmul %221, %222, %cst_75 {dimension_numbers = #tpu.dot_dimension_numbers<[2], [2], [1], [1], [0, 0, 0, 1, 1, 1], [0], [0]>} : vector<2x4x32xf32>, vector<2x4x32xf32>, vector<2x4x4xf32> -> vector<2x4x4xf32>
    "tpu.trace_stop"() : () -> ()
    %cst_76 = arith.constant dense<0xFF800000> : vector<2x4xf32>
    %225 = vector.multi_reduction <maximumf>, %224, %cst_76 [2] : vector<2x4x4xf32> to vector<2x4xf32>
    %226 = vector.shape_cast %225 : vector<2x4xf32> to vector<2x4x1xf32>
    %227 = vector.broadcast %226 : vector<2x4x1xf32> to vector<2x4x4xf32>
    %228 = arith.subf %224, %227 : vector<2x4x4xf32>
    %229 = math.exp %228 : vector<2x4x4xf32>
    %cst_77 = arith.constant dense<0.000000e+00> : vector<2x4xf32>
    %230 = vector.multi_reduction <add>, %229, %cst_77 [2] : vector<2x4x4xf32> to vector<2x4xf32>
    %231 = vector.shape_cast %230 : vector<2x4xf32> to vector<2x4x1xf32>
    %232 = tpu.reciprocal %231 {approx = true} : vector<2x4x1xf32> -> vector<2x4x1xf32>
    %233 = vector.broadcast %232 : vector<2x4x1xf32> to vector<2x4x4xf32>
    %234 = arith.mulf %229, %233 : vector<2x4x4xf32>
    "tpu.trace_start"() <{level = 10 : i32, message = "bqk,bkd->bqd"}> : () -> ()
    %cst_78 = arith.constant dense<0.000000e+00> : vector<2x4x32xf32>
    %235 = tpu.matmul %234, %223, %cst_78 {dimension_numbers = #tpu.dot_dimension_numbers<[2], [1], [1], [2], [0, 0, 0, 1, 1, 2], [0], [0]>} : vector<2x4x4xf32>, vector<2x4x32xf32>, vector<2x4x32xf32> -> vector<2x4x32xf32>
    "tpu.trace_stop"() : () -> ()
    %236 = tpu.concatenate %190, %205, %220, %235 in 2 : vector<2x4x32xf32>, vector<2x4x32xf32>, vector<2x4x32xf32>, vector<2x4x32xf32> -> vector<2x4x128xf32>
    %237 = vector.shape_cast %236 : vector<2x4x128xf32> to vector<8x128xf32>
    %cst_79 = arith.constant dense<0.000000e+00> : vector<8x128xf32>
    %238 = tpu.matmul %237, %156, %cst_79 {dimension_numbers = #tpu.dot_dimension_numbers<[1], [0], [0], [1], [0, 0, 1, 1], [], []>} : vector<8x128xf32>, vector<128x128xf32>, vector<8x128xf32> -> vector<8x128xf32>
    %239 = vector.broadcast %160 : vector<1x128xf32> to vector<8x128xf32>
    %240 = arith.addf %238, %239 : vector<8x128xf32>
    %241 = arith.addf %154, %240 : vector<8x128xf32>
    %cst_80 = arith.constant dense<0.000000e+00> : vector<8xf32>
    %242 = vector.multi_reduction <add>, %241, %cst_80 [1] : vector<8x128xf32> to vector<8xf32>
    %243 = vector.shape_cast %242 : vector<8xf32> to vector<8x1xf32>
    %cst_81 = arith.constant 1.280000e+02 : f32
    %244 = vector.broadcast %cst_81 : f32 to vector<8x1xf32>
    %245 = arith.divf %243, %244 : vector<8x1xf32>
    %246 = vector.broadcast %245 : vector<8x1xf32> to vector<8x128xf32>
    %247 = arith.subf %241, %246 : vector<8x128xf32>
    %248 = arith.mulf %247, %247 : vector<8x128xf32>
    %cst_82 = arith.constant dense<0.000000e+00> : vector<8xf32>
    %249 = vector.multi_reduction <add>, %248, %cst_82 [1] : vector<8x128xf32> to vector<8xf32>
    %250 = vector.shape_cast %249 : vector<8xf32> to vector<8x1xf32>
    %cst_83 = arith.constant 1.280000e+02 : f32
    %251 = vector.broadcast %cst_83 : f32 to vector<8x1xf32>
    %252 = arith.divf %250, %251 : vector<8x1xf32>
    %253 = vector.broadcast %245 : vector<8x1xf32> to vector<8x128xf32>
    %254 = arith.subf %241, %253 : vector<8x128xf32>
    %cst_84 = arith.constant 9.99999974E-6 : f32
    %255 = vector.broadcast %cst_84 : f32 to vector<8x1xf32>
    %256 = arith.addf %252, %255 : vector<8x1xf32>
    %257 = math.rsqrt %256 : vector<8x1xf32>
    %258 = vector.broadcast %257 : vector<8x1xf32> to vector<8x128xf32>
    %259 = arith.mulf %254, %258 : vector<8x128xf32>
    %260 = vector.broadcast %163 : vector<1x128xf32> to vector<8x128xf32>
    %261 = arith.mulf %259, %260 : vector<8x128xf32>
    %262 = vector.broadcast %164 : vector<1x128xf32> to vector<8x128xf32>
    %263 = arith.addf %261, %262 : vector<8x128xf32>
    %cst_85 = arith.constant dense<0.000000e+00> : vector<8x256xf32>
    %264 = tpu.matmul %263, %157, %cst_85 {dimension_numbers = #tpu.dot_dimension_numbers<[1], [0], [0], [1], [0, 0, 1, 1], [], []>} : vector<8x128xf32>, vector<128x256xf32>, vector<8x256xf32> -> vector<8x256xf32>
    %265 = vector.broadcast %161 : vector<1x256xf32> to vector<8x256xf32>
    %266 = arith.addf %264, %265 : vector<8x256xf32>
    %cst_86 = arith.constant 0.000000e+00 : f32
    %267 = vector.broadcast %cst_86 : f32 to vector<8x256xf32>
    %268 = arith.maximumf %266, %267 : vector<8x256xf32>
    %cst_87 = arith.constant dense<0.000000e+00> : vector<8x128xf32>
    %269 = tpu.matmul %268, %158, %cst_87 {dimension_numbers = #tpu.dot_dimension_numbers<[1], [0], [0], [1], [0, 0, 1, 1], [], []>} : vector<8x256xf32>, vector<256x128xf32>, vector<8x128xf32> -> vector<8x128xf32>
    %270 = vector.broadcast %162 : vector<1x128xf32> to vector<8x128xf32>
    %271 = arith.addf %269, %270 : vector<8x128xf32>
    %272 = arith.addf %263, %271 : vector<8x128xf32>
    %cst_88 = arith.constant dense<0.000000e+00> : vector<8xf32>
    %273 = vector.multi_reduction <add>, %272, %cst_88 [1] : vector<8x128xf32> to vector<8xf32>
    %274 = vector.shape_cast %273 : vector<8xf32> to vector<8x1xf32>
    %cst_89 = arith.constant 1.280000e+02 : f32
    %275 = vector.broadcast %cst_89 : f32 to vector<8x1xf32>
    %276 = arith.divf %274, %275 : vector<8x1xf32>
    %277 = vector.broadcast %276 : vector<8x1xf32> to vector<8x128xf32>
    %278 = arith.subf %272, %277 : vector<8x128xf32>
    %279 = arith.mulf %278, %278 : vector<8x128xf32>
    %cst_90 = arith.constant dense<0.000000e+00> : vector<8xf32>
    %280 = vector.multi_reduction <add>, %279, %cst_90 [1] : vector<8x128xf32> to vector<8xf32>
    %281 = vector.shape_cast %280 : vector<8xf32> to vector<8x1xf32>
    %cst_91 = arith.constant 1.280000e+02 : f32
    %282 = vector.broadcast %cst_91 : f32 to vector<8x1xf32>
    %283 = arith.divf %281, %282 : vector<8x1xf32>
    %284 = vector.broadcast %276 : vector<8x1xf32> to vector<8x128xf32>
    %285 = arith.subf %272, %284 : vector<8x128xf32>
    %cst_92 = arith.constant 9.99999974E-6 : f32
    %286 = vector.broadcast %cst_92 : f32 to vector<8x1xf32>
    %287 = arith.addf %283, %286 : vector<8x1xf32>
    %288 = math.rsqrt %287 : vector<8x1xf32>
    %289 = vector.broadcast %288 : vector<8x1xf32> to vector<8x128xf32>
    %290 = arith.mulf %285, %289 : vector<8x128xf32>
    %291 = vector.broadcast %165 : vector<1x128xf32> to vector<8x128xf32>
    %292 = arith.mulf %290, %291 : vector<8x128xf32>
    %293 = vector.broadcast %166 : vector<1x128xf32> to vector<8x128xf32>
    %294 = arith.addf %292, %293 : vector<8x128xf32>
    %295 = vector.shape_cast %294 : vector<8x128xf32> to vector<2x4x128xf32>
    %cst_93 = arith.constant dense<0.000000e+00> : vector<2x128xf32>
    %296 = vector.multi_reduction <add>, %295, %cst_93 [1] : vector<2x4x128xf32> to vector<2x128xf32>
    %cst_94 = arith.constant 4.000000e+00 : f32
    %297 = vector.broadcast %cst_94 : f32 to vector<2x128xf32>
    %298 = arith.divf %296, %297 : vector<2x128xf32>
    %c0_95 = arith.constant 0 : index
    %c1536 = arith.constant 1536 : index
    %299 = vector.load %arg3[%c0_95, %c1536] : memref<128x1664xf32, #tpu.memory_space<vmem>>, vector<128x128xf32>
    %c2 = arith.constant 2 : index
    %c0_96 = arith.constant 0 : index
    %300 = vector.load %arg2[%c2, %c0_96] : memref<23x384xf32, #tpu.memory_space<vmem>>, vector<1x128xf32>
    %cst_97 = arith.constant dense<0.000000e+00> : vector<2x128xf32>
    %301 = tpu.matmul %298, %299, %cst_97 {dimension_numbers = #tpu.dot_dimension_numbers<[1], [0], [0], [1], [0, 0, 1, 1], [], []>} : vector<2x128xf32>, vector<128x128xf32>, vector<2x128xf32> -> vector<2x128xf32>
    %302 = vector.broadcast %300 : vector<1x128xf32> to vector<2x128xf32>
    %303 = arith.addf %301, %302 : vector<2x128xf32>
    %c0_98 = arith.constant 0 : index
    %c0_99 = arith.constant 0 : index
    %304 = vector.load %arg5[%c0_98, %c0_99] : memref<2x128xf32, #tpu.memory_space<vmem>>, vector<2x128xf32>
    tpu.vector_store %arg5[%c0_98, %c0_99], %303 {strides = array<i32>} : memref<2x128xf32, #tpu.memory_space<vmem>>, vector<2x128xf32>,
    return
  }
  func.func @transform_0(%arg0: i32) -> (i32, i32, i32) {
    %c0_i32 = arith.constant 0 : i32
    %c0_i32_0 = arith.constant 0 : i32
    %c0_i32_1 = arith.constant 0 : i32
    return %arg0, %c0_i32, %c0_i32_0 : i32, i32, i32
  }
  func.func @transform_1(%arg0: i32) -> (i32, i32) {
    %c0_i32 = arith.constant 0 : i32
    %c0_i32_0 = arith.constant 0 : i32
    %c0_i32_1 = arith.constant 0 : i32
    return %c0_i32, %c0_i32_0 : i32, i32
  }
  func.func @transform_2(%arg0: i32) -> (i32, i32) {
    %c0_i32 = arith.constant 0 : i32
    %c0_i32_0 = arith.constant 0 : i32
    %c0_i32_1 = arith.constant 0 : i32
    return %c0_i32, %c0_i32_0 : i32, i32
  }
  func.func @transform_3(%arg0: i32) -> (i32, i32) {
    %c0_i32 = arith.constant 0 : i32
    %c0_i32_0 = arith.constant 0 : i32
    %c0_i32_1 = arith.constant 0 : i32
    return %c0_i32, %c0_i32_0 : i32, i32
  }
  func.func @transform_4(%arg0: i32) -> (i32, i32) {
    %c0_i32 = arith.constant 0 : i32
    %c0_i32_0 = arith.constant 0 : i32
    return %arg0, %c0_i32 : i32, i32
  }
}

</mosaic_0001>

<llo_original>
// kernel: tpu_custom_call.1
$region0: #{tpu_custom_call.1}
  #allocation0 [shape = 'u32[]', space=smem, size = 0x4, offset = 0x4, fixed_abs, tag = 'smem constant byte address 0x4 - core index']
  #allocation1 [shape = 'u32[72,128]{1,0:T(1,128)}', space=vmem, size = 0x9000, scoped, tag = 'internal scratch']
  %s0 = inlined_call_operand.vmem [shape: f32[2,4,1], index: 0, kind: input, shape index: {}]
  %s1 = inlined_call_operand.hbm [shape: f32[23,384], index: 1, kind: input, shape index: {}]
  %s2 = inlined_call_operand.hbm [shape: f32[128,1664], index: 2, kind: input, shape index: {}]
  %s3 = inlined_call_operand.hbm [shape: f32[512,128], index: 3, kind: input, shape index: {}]
  %s4 = inlined_call_operand.hbm [shape: f32[2,128], index: 4, kind: output, shape index: {}]
  %s5 = sld [smem:[#allocation0]]
  $region38: #{tpu_custom_call.1} parent=0
    _
  %s7 = ssub.s32 1, %s5
  %s8 = scalar_select 0, %s7, %s5
  $region1: #{tpu_custom_call.1} parent=0
    #allocation2 [shape = 'u8[36864]{0}', space=vmem, size = 0x9000, scoped, tag = 'input window, operand 1, single buffered']
    #allocation3 [shape = 's32[1]{0}', space=sflag, size = 0x4, scoped, tag = 'scoped memory for tpu_custom_call.1']
    #allocation4 [shape = 's32[1]{0}', space=sflag, size = 0x4, scoped, tag = 'scoped memory for tpu_custom_call.1']
    #allocation5 [shape = 'u8[851968]{0}', space=vmem, size = 0xd0000, scoped, tag = 'input window, operand 2, single buffered']
    #allocation6 [shape = 's32[1]{0}', space=sflag, size = 0x4, scoped, tag = 'scoped memory for tpu_custom_call.1']
    #allocation7 [shape = 'u8[262144]{0}', space=vmem, size = 0x40000, scoped, tag = 'input window, operand 3, single buffered']
    #allocation8 [shape = 'u8[1024]{0}', space=vmem, size = 0x400, scoped, tag = 'output window, operand 0, single buffered']
    %9 = vsyncpa [#allocation3], 0
    %10 = vsyncpa [#allocation6], 0
    %11 = vsyncpa [#allocation4], 0
    // Predicated region
    $region2: #{tpu_custom_call.1} parent=1 // pred_check
      _
    $region3: #{tpu_custom_call.1} parent=1 // pred_check_branch
      %13 = sbr.rel (0) target = $region5
    $region4: #{tpu_custom_call.1} parent=1 // pred_region
      _
    $region5: #{tpu_custom_call.1} parent=1 // pred_fallthru
      _
    // Predicated region
    $region6: #{tpu_custom_call.1} parent=1 // pred_check
      _
    $region7: #{tpu_custom_call.1} parent=1 // pred_check_branch
      %15 = sbr.rel (0) target = $region9
    $region8: #{tpu_custom_call.1} parent=1 // pred_region
      %17 = vsyncadd [#allocation3], 0
      %s18 = sshll.u32 %s1, 4
      %s19 = int_to_ptr.hbm [resolvable:$true] %s18
      %s20 = sshll.u32 [#allocation2], 4
      %s21 = int_to_ptr.vmem [resolvable:$true] %s20
      %26 = dma.hbm_to_vmem [thread:$0]  %s19, 1152, %s21, [#allocation3], 384, 384, 24
    $region9: #{tpu_custom_call.1} parent=1 // pred_fallthru
      _
    // Predicated region
    $region10: #{tpu_custom_call.1} parent=1 // pred_check
      _
    $region11: #{tpu_custom_call.1} parent=1 // pred_check_branch
      %28 = sbr.rel (0) target = $region13
    $region12: #{tpu_custom_call.1} parent=1 // pred_region
      %30 = vsyncadd [#allocation6], 0
      %s31 = sshll.u32 %s2, 4
      %s32 = int_to_ptr.hbm [resolvable:$true] %s31
      %s33 = sshll.u32 [#allocation5], 4
      %s34 = int_to_ptr.vmem [resolvable:$true] %s33
      %39 = dma.hbm_to_vmem [thread:$0]  %s32, 26624, %s34, [#allocation6], 1664, 1664, 104
    $region13: #{tpu_custom_call.1} parent=1 // pred_fallthru
      _
    // Predicated region
    $region14: #{tpu_custom_call.1} parent=1 // pred_check
      _
    $region15: #{tpu_custom_call.1} parent=1 // pred_check_branch
      %41 = sbr.rel (0) target = $region17
    $region16: #{tpu_custom_call.1} parent=1 // pred_region
      %43 = vsyncadd [#allocation6], 0
      %s44 = sshll.u32 %s3, 4
      %s45 = int_to_ptr.hbm [resolvable:$true] %s44
      %s46 = sshll.u32 [#allocation7], 4
      %s47 = int_to_ptr.vmem [resolvable:$true] %s46
      %52 = dma.hbm_to_vmem [thread:$0]  %s45, 8192, %s47, [#allocation6], 128, 128, 8
    $region17: #{tpu_custom_call.1} parent=1 // pred_fallthru
      _
    // Predicated region
    $region18: #{tpu_custom_call.1} parent=1 // pred_check
      _
    $region19: #{tpu_custom_call.1} parent=1 // pred_check_branch
      %54 = sbr.rel (0) target = $region21
    $region20: #{tpu_custom_call.1} parent=1 // pred_region
      %56 = dma.done [#allocation3], 1152
    $region21: #{tpu_custom_call.1} parent=1 // pred_fallthru
      _
    // Predicated region
    $region22: #{tpu_custom_call.1} parent=1 // pred_check
      _
    $region23: #{tpu_custom_call.1} parent=1 // pred_check_branch
      %58 = sbr.rel (0) target = $region25
    $region24: #{tpu_custom_call.1} parent=1 // pred_region
      %60 = dma.done [#allocation6], 26624
    $region25: #{tpu_custom_call.1} parent=1 // pred_fallthru
      _
    // Predicated region
    $region26: #{tpu_custom_call.1} parent=1 // pred_check
      _
    $region27: #{tpu_custom_call.1} parent=1 // pred_check_branch
      %62 = sbr.rel (0) target = $region29
    $region28: #{tpu_custom_call.1} parent=1 // pred_region
      %64 = dma.done [#allocation6], 8192
    $region29: #{tpu_custom_call.1} parent=1 // pred_fallthru
      _
    %v65 = vld [vmem:[%s0] sm:$0xf]
    %v66 = vld [vmem:[%s0 + $0x4] sm:$0xf]
    %v67 = vld [vmem:[#allocation2] ss:$0 sm:$0xff]
    %v68 = vld [vmem:[#allocation2 + $0x1] ss:$0 sm:$0xff]
    %70 = vset.pattern.permute.xlu0 0
    %71 = vperm.xlu0 %70, %v65
    %v72 = vpop.permute.xlu0 %71
    %v75 = vunpack.c.l.s4 839922192
    %v76 = vunpack.c.0.s8 %v75
    %v77 = vperm.slane %v72, %v76
    %79 = vset.pattern.permute.xlu0 0
    %80 = vperm.xlu0 %79, %v66
    %v81 = vpop.permute.xlu0 %80
    %v84 = vunpack.c.l.s4 839922192
    %v85 = vunpack.c.0.s8 %v84
    %v86 = vperm.slane %v81, %v85
    %v88 = vrot.slane %v67, 4
    %v90 = vmul.f32 %v77, %v67
    %v91 = vmul.f32 %v86, %v88
    %v93 = vrot.slane %v68, 4
    %v95 = vadd.f32 %v90, %v68
    %v96 = vadd.f32 %v91, %v93
    %v97 = vld [vmem:[#allocation2] sm:$0x78]
    %v99 = vrot.slane %v97, 4
    %vm100 = vcmask 1040384
    %vm101 = vcmask 1044484
    %vm102 = vmor %vm100, %vm101
    %v103 = vrot.slane %v97, 7
    %v104 = vrot.slane %v103, 4
    %v105 = vrot.slane %v99, 7
    %v106 = vsel %vm102, %v104, %v105
    %v108 = vadd.f32 %v95, %v106
    %v109 = vadd.f32 %v96, %v106
    %v110 = vld [vmem:[#allocation5] sm:$0xff]
    %v111 = vld [vmem:[#allocation5 + $0x8] sm:$0xff]
    %v112 = vld [vmem:[#allocation5 + $0x10] sm:$0xff]
    %v113 = vld [vmem:[#allocation5 + $0x68] sm:$0xff]
    %v114 = vld [vmem:[#allocation5 + $0x70] sm:$0xff]
    %v115 = vld [vmem:[#allocation5 + $0x78] sm:$0xff]
    %v116 = vld [vmem:[#allocation5 + $0xd0] sm:$0xff]
    %v117 = vld [vmem:[#allocation5 + $0xd8] sm:$0xff]
    %v118 = vld [vmem:[#allocation5 + $0xe0] sm:$0xff]
    %v119 = vld [vmem:[#allocation5 + $0x138] sm:$0xff]
    %v120 = vld [vmem:[#allocation5 + $0x140] sm:$0xff]
    %v121 = vld [vmem:[#allocation5 + $0x148] sm:$0xff]
    %v122 = vld [vmem:[#allocation5 + $0x1a0] sm:$0xff]
    %v123 = vld [vmem:[#allocation5 + $0x1a8] sm:$0xff]
    %v124 = vld [vmem:[#allocation5 + $0x1b0] sm:$0xff]
    %v125 = vld [vmem:[#allocation5 + $0x208] sm:$0xff]
    %v126 = vld [vmem:[#allocation5 + $0x210] sm:$0xff]
    %v127 = vld [vmem:[#allocation5 + $0x218] sm:$0xff]
    %v128 = vld [vmem:[#allocation5 + $0x270] sm:$0xff]
    %v129 = vld [vmem:[#allocation5 + $0x278] sm:$0xff]
    %v130 = vld [vmem:[#allocation5 + $0x280] sm:$0xff]
    %v131 = vld [vmem:[#allocation5 + $0x2d8] sm:$0xff]
    %v132 = vld [vmem:[#allocation5 + $0x2e0] sm:$0xff]
    %v133 = vld [vmem:[#allocation5 + $0x2e8] sm:$0xff]
    %v134 = vld [vmem:[#allocation5 + $0x340] sm:$0xff]
    %v135 = vld [vmem:[#allocation5 + $0x348] sm:$0xff]
    %v136 = vld [vmem:[#allocation5 + $0x350] sm:$0xff]
    %v137 = vld [vmem:[#allocation5 + $0x3a8] sm:$0xff]
    %v138 = vld [vmem:[#allocation5 + $0x3b0] sm:$0xff]
    %v139 = vld [vmem:[#allocation5 + $0x3b8] sm:$0xff]
    %v140 = vld [vmem:[#allocation5 + $0x410] sm:$0xff]
    %v141 = vld [vmem:[#allocation5 + $0x418] sm:$0xff]
    %v142 = vld [vmem:[#allocation5 + $0x420] sm:$0xff]
    %v143 = vld [vmem:[#allocation5 + $0x478] sm:$0xff]
    %v144 = vld [vmem:[#allocation5 + $0x480] sm:$0xff]
    %v145 = vld [vmem:[#allocation5 + $0x488] sm:$0xff]
    %v146 = vld [vmem:[#allocation5 + $0x4e0] sm:$0xff]
    %v147 = vld [vmem:[#allocation5 + $0x4e8] sm:$0xff]
    %v148 = vld [vmem:[#allocation5 + $0x4f0] sm:$0xff]
    %v149 = vld [vmem:[#allocation5 + $0x548] sm:$0xff]
    %v150 = vld [vmem:[#allocation5 + $0x550] sm:$0xff]
    %v151 = vld [vmem:[#allocation5 + $0x558] sm:$0xff]
    %v152 = vld [vmem:[#allocation5 + $0x5b0] sm:$0xff]
    %v153 = vld [vmem:[#allocation5 + $0x5b8] sm:$0xff]
    %v154 = vld [vmem:[#allocation5 + $0x5c0] sm:$0xff]
    %v155 = vld [vmem:[#allocation5 + $0x618] sm:$0xff]
    %v156 = vld [vmem:[#allocation5 + $0x620] sm:$0xff]
    %v157 = vld [vmem:[#allocation5 + $0x628] sm:$0xff]
    %v158 = vld [vmem:[#allocation5 + $0x18] sm:$0xff]
    %v159 = vld [vmem:[#allocation5 + $0x80] sm:$0xff]
    %v160 = vld [vmem:[#allocation5 + $0xe8] sm:$0xff]
    %v161 = vld [vmem:[#allocation5 + $0x150] sm:$0xff]
    %v162 = vld [vmem:[#allocation5 + $0x1b8] sm:$0xff]
    %v163 = vld [vmem:[#allocation5 + $0x220] sm:$0xff]
    %v164 = vld [vmem:[#allocation5 + $0x288] sm:$0xff]
    %v165 = vld [vmem:[#allocation5 + $0x2f0] sm:$0xff]
    %v166 = vld [vmem:[#allocation5 + $0x358] sm:$0xff]
    %v167 = vld [vmem:[#allocation5 + $0x3c0] sm:$0xff]
    %v168 = vld [vmem:[#allocation5 + $0x428] sm:$0xff]
    %v169 = vld [vmem:[#allocation5 + $0x490] sm:$0xff]
    %v170 = vld [vmem:[#allocation5 + $0x4f8] sm:$0xff]
    %v171 = vld [vmem:[#allocation5 + $0x560] sm:$0xff]
    %v172 = vld [vmem:[#allocation5 + $0x5c8] sm:$0xff]
    %v173 = vld [vmem:[#allocation5 + $0x630] sm:$0xff]
    %v174 = vld [vmem:[#allocation5 + $0x20] sm:$0xff]
    %v175 = vld [vmem:[#allocation5 + $0x28] sm:$0xff]
    %v176 = vld [vmem:[#allocation5 + $0x88] sm:$0xff]
    %v177 = vld [vmem:[#allocation5 + $0x90] sm:$0xff]
    %v178 = vld [vmem:[#allocation5 + $0xf0] sm:$0xff]
    %v179 = vld [vmem:[#allocation5 + $0xf8] sm:$0xff]
    %v180 = vld [vmem:[#allocation5 + $0x158] sm:$0xff]
    %v181 = vld [vmem:[#allocation5 + $0x160] sm:$0xff]
    %v182 = vld [vmem:[#allocation5 + $0x1c0] sm:$0xff]
    %v183 = vld [vmem:[#allocation5 + $0x1c8] sm:$0xff]
    %v184 = vld [vmem:[#allocation5 + $0x228] sm:$0xff]
    %v185 = vld [vmem:[#allocation5 + $0x230] sm:$0xff]
    %v186 = vld [vmem:[#allocation5 + $0x290] sm:$0xff]
    %v187 = vld [vmem:[#allocation5 + $0x298] sm:$0xff]
    %v188 = vld [vmem:[#allocation5 + $0x2f8] sm:$0xff]
    %v189 = vld [vmem:[#allocation5 + $0x300] sm:$0xff]
    %v190 = vld [vmem:[#allocation5 + $0x360] sm:$0xff]
    %v191 = vld [vmem:[#allocation5 + $0x368] sm:$0xff]
    %v192 = vld [vmem:[#allocation5 + $0x3c8] sm:$0xff]
    %v193 = vld [vmem:[#allocation5 + $0x3d0] sm:$0xff]
    %v194 = vld [vmem:[#allocation5 + $0x430] sm:$0xff]
    %v195 = vld [vmem:[#allocation5 + $0x438] sm:$0xff]
    %v196 = vld [vmem:[#allocation5 + $0x498] sm:$0xff]
    %v197 = vld [vmem:[#allocation5 + $0x4a0] sm:$0xff]
    %v198 = vld [vmem:[#allocation5 + $0x500] sm:$0xff]
    %v199 = vld [vmem:[#allocation5 + $0x508] sm:$0xff]
    %v200 = vld [vmem:[#allocation5 + $0x568] sm:$0xff]
    %v201 = vld [vmem:[#allocation5 + $0x570] sm:$0xff]
    %v202 = vld [vmem:[#allocation5 + $0x5d0] sm:$0xff]
    %v203 = vld [vmem:[#allocation5 + $0x5d8] sm:$0xff]
    %v204 = vld [vmem:[#allocation5 + $0x638] sm:$0xff]
    %v205 = vld [vmem:[#allocation5 + $0x640] sm:$0xff]
    %v206 = vld [vmem:[#allocation7] sm:$0xff]
    %v207 = vld [vmem:[#allocation7 + $0x8] sm:$0xff]
    %v208 = vld [vmem:[#allocation7 + $0x10] sm:$0xff]
    %v209 = vld [vmem:[#allocation7 + $0x18] sm:$0xff]
    %v210 = vld [vmem:[#allocation7 + $0x20] sm:$0xff]
    %v211 = vld [vmem:[#allocation7 + $0x28] sm:$0xff]
    %v212 = vld [vmem:[#allocation7 + $0x30] sm:$0xff]
    %v213 = vld [vmem:[#allocation7 + $0x38] sm:$0xff]
    %v214 = vld [vmem:[#allocation7 + $0x40] sm:$0xff]
    %v215 = vld [vmem:[#allocation7 + $0x48] sm:$0xff]
    %v216 = vld [vmem:[#allocation7 + $0x50] sm:$0xff]
    %v217 = vld [vmem:[#allocation7 + $0x58] sm:$0xff]
    %v218 = vld [vmem:[#allocation7 + $0x60] sm:$0xff]
    %v219 = vld [vmem:[#allocation7 + $0x68] sm:$0xff]
    %v220 = vld [vmem:[#allocation7 + $0x70] sm:$0xff]
    %v221 = vld [vmem:[#allocation7 + $0x78] sm:$0xff]
    %v222 = vld [vmem:[#allocation7 + $0x80] sm:$0xff]
    %v223 = vld [vmem:[#allocation7 + $0x88] sm:$0xff]
    %v224 = vld [vmem:[#allocation7 + $0x90] sm:$0xff]
    %v225 = vld [vmem:[#allocation7 + $0x98] sm:$0xff]
    %v226 = vld [vmem:[#allocation7 + $0xa0] sm:$0xff]
    %v227 = vld [vmem:[#allocation7 + $0xa8] sm:$0xff]
    %v228 = vld [vmem:[#allocation7 + $0xb0] sm:$0xff]
    %v229 = vld [vmem:[#allocation7 + $0xb8] sm:$0xff]
    %v230 = vld [vmem:[#allocation7 + $0xc0] sm:$0xff]
    %v231 = vld [vmem:[#allocation7 + $0xc8] sm:$0xff]
    %v232 = vld [vmem:[#allocation7 + $0xd0] sm:$0xff]
    %v233 = vld [vmem:[#allocation7 + $0xd8] sm:$0xff]
    %v234 = vld [vmem:[#allocation7 + $0xe0] sm:$0xff]
    %v235 = vld [vmem:[#allocation7 + $0xe8] sm:$0xff]
    %v236 = vld [vmem:[#allocation7 + $0xf0] sm:$0xff]
    %v237 = vld [vmem:[#allocation7 + $0xf8] sm:$0xff]
    %s238 = scalar_lea.vmem [#allocation2], 7
    %v239 = vld [vmem:[%s238] ss:$8 sm:$0x7]
    %v240 = vld [vmem:[#allocation2 + $0x18] ss:$0 sm:$0xff]
    %s241 = scalar_lea.vmem [#allocation2], 25
    %v242 = vld [vmem:[%s241] ss:$8 sm:$0x3]
    %v243 = vld [vmem:[#allocation2 + $0x1a] ss:$0 sm:$0xff]
    %v244 = vld [vmem:[#allocation2 + $0x1b] ss:$0 sm:$0xff]
    %v245 = vld [vmem:[#allocation2 + $0x1c] ss:$0 sm:$0xff]
    %v246 = vld [vmem:[#allocation2 + $0x1d] ss:$0 sm:$0xff]
    %v247 = vld [vmem:[#allocation2 + $0x1e] ss:$0 sm:$0xff]
    %v249 = vperm.slane %v239, 0
    %v250 = vperm.slane %v239, 1
    %v251 = vperm.slane %v239, 2
    %257 = vst [vmem:[#allocation1] ss:$2 sm:$0xff] %v108
    %s258 = scalar_lea.vmem [#allocation1], 1
    %259 = vst [vmem:[%s258] ss:$2 sm:$0xff] %v109
    %v260 = vld.sshfl [vmem:[#allocation1] sm:$0xff pattern:$0x75316420]
    %262 = vmatpush.msra.mxu0 %v155
    %263 = vmatpush.msra.mxu0 %v152
    %264 = vmatpush.msra.mxu0 %v149
    %265 = vmatpush.msra.mxu0 %v146
    %266 = vmatpush.msra.mxu0 %v143
    %267 = vmatpush.msra.mxu0 %v140
    %268 = vmatpush.msra.mxu0 %v137
    %269 = vmatpush.msra.mxu0 %v134
    %270 = vmatpush.msra.mxu0 %v131
    %271 = vmatpush.msra.mxu0 %v128
    %272 = vmatpush.msra.mxu0 %v125
    %273 = vmatpush.msra.mxu0 %v122
    %274 = vmatpush.msra.mxu0 %v119
    %275 = vmatpush.msra.mxu0 %v116
    %276 = vmatpush.msra.mxu0 %v113
    %277 = vmatpush.msra.mxu0 %v110
    %278 = vmatmul.f32.gmra.mxu0 %v260
    %v279 = vpop.f32.mrf.mxu0
    %v280 = vadd.f32 %v249, %v279
    %281 = vdwg.mxu0
    %282 = vmatpush.msra.mxu0 %v156
    %283 = vmatpush.msra.mxu0 %v153
    %284 = vmatpush.msra.mxu0 %v150
    %285 = vmatpush.msra.mxu0 %v147
    %286 = vmatpush.msra.mxu0 %v144
    %287 = vmatpush.msra.mxu0 %v141
    %288 = vmatpush.msra.mxu0 %v138
    %289 = vmatpush.msra.mxu0 %v135
    %290 = vmatpush.msra.mxu0 %v132
    %291 = vmatpush.msra.mxu0 %v129
    %292 = vmatpush.msra.mxu0 %v126
    %293 = vmatpush.msra.mxu0 %v123
    %294 = vmatpush.msra.mxu0 %v120
    %295 = vmatpush.msra.mxu0 %v117
    %296 = vmatpush.msra.mxu0 %v114
    %297 = vmatpush.msra.mxu0 %v111
    %298 = vmatmul.f32.gmra.mxu0 %v260
    %v299 = vpop.f32.mrf.mxu0
    %v300 = vadd.f32 %v250, %v299
    %301 = vdwg.mxu0
    %302 = vmatpush.msra.mxu0 %v157
    %303 = vmatpush.msra.mxu0 %v154
    %304 = vmatpush.msra.mxu0 %v151
    %305 = vmatpush.msra.mxu0 %v148
    %306 = vmatpush.msra.mxu0 %v145
    %307 = vmatpush.msra.mxu0 %v142
    %308 = vmatpush.msra.mxu0 %v139
    %309 = vmatpush.msra.mxu0 %v136
    %310 = vmatpush.msra.mxu0 %v133
    %311 = vmatpush.msra.mxu0 %v130
    %312 = vmatpush.msra.mxu0 %v127
    %313 = vmatpush.msra.mxu0 %v124
    %314 = vmatpush.msra.mxu0 %v121
    %315 = vmatpush.msra.mxu0 %v118
    %316 = vmatpush.msra.mxu0 %v115
    %317 = vmatpush.msra.mxu0 %v112
    %318 = vmatmul.f32.gmra.mxu0 %v260
    %v319 = vpop.f32.mrf.mxu0
    %v320 = vadd.f32 %v251, %v319
    %321 = vdwg.mxu0
    %v323 = vrot.slane %v280, 4
    %v325 = vrot.slane %v300, 4
    %v327 = vrot.slane %v320, 4
    %vm328 = vcmask 261120
    %v329 = vsel %vm328, %v280, 0
    %v331 = vsel %vm328, %v300, 0
    %333 = vmatpush.xpose.msra.mxu0 0.0
    %334 = vmatpush.xpose.msra.mxu0 0.0
    %335 = vmatpush.xpose.msra.mxu0 0.0
    %336 = vmatpush.xpose.msra.mxu0 0.0
    %337 = vmatpush.xpose.msra.mxu0 0.0
    %338 = vmatpush.xpose.msra.mxu0 0.0
    %339 = vmatpush.xpose.msra.mxu0 0.0
    %340 = vmatpush.xpose.msra.mxu0 0.0
    %341 = vmatpush.xpose.msra.mxu0 0.0
    %342 = vmatpush.xpose.msra.mxu0 0.0
    %343 = vmatpush.xpose.msra.mxu0 0.0
    %344 = vmatpush.xpose.msra.mxu0 0.0
    %345 = vmatpush.xpose.msra.mxu0 0.0
    %346 = vmatpush.xpose.msra.mxu0 0.0
    %347 = vmatpush.xpose.msra.mxu0 0.0
    %348 = vmatpush.xpose.msra.mxu0 %v331
    %349 = vmatmul.f32.gmra.mxu0 %v329
    %v350 = vpop.f32.mrf.mxu0
    %v351 = vadd.f32 0.0, %v350
    %352 = vdwg.mxu0
    %v353 = vsel %vm328, %v323, 0
    %v355 = vsel %vm328, %v325, 0
    %357 = vmatpush.xpose.msra.mxu0 0.0
    %358 = vmatpush.xpose.msra.mxu0 0.0
    %359 = vmatpush.xpose.msra.mxu0 0.0
    %360 = vmatpush.xpose.msra.mxu0 0.0
    %361 = vmatpush.xpose.msra.mxu0 0.0
    %362 = vmatpush.xpose.msra.mxu0 0.0
    %363 = vmatpush.xpose.msra.mxu0 0.0
    %364 = vmatpush.xpose.msra.mxu0 0.0
    %365 = vmatpush.xpose.msra.mxu0 0.0
    %366 = vmatpush.xpose.msra.mxu0 0.0
    %367 = vmatpush.xpose.msra.mxu0 0.0
    %368 = vmatpush.xpose.msra.mxu0 0.0
    %369 = vmatpush.xpose.msra.mxu0 0.0
    %370 = vmatpush.xpose.msra.mxu0 0.0
    %371 = vmatpush.xpose.msra.mxu0 0.0
    %372 = vmatpush.xpose.msra.mxu0 %v355
    %373 = vmatmul.f32.gmra.mxu0 %v353
    %v374 = vpop.f32.mrf.mxu0
    %v375 = vadd.f32 0.0, %v374
    %376 = vdwg.mxu0
    %vm377 = vcmask 27648
    %v378 = vsel %vm377, %v351, -inf
    %379 = vmax.xlane.f32.xlu0 %v378
    %v380 = vpop.xlane.xlu0 %379
    %v381 = vsel %vm377, %v375, -inf
    %382 = vmax.xlane.f32.xlu0 %v381
    %v383 = vpop.xlane.xlu0 %382
    %v384 = vsub.f32 %v351, %v380
    %v385 = vsub.f32 %v375, %v383
    %v386 = vmul.f32 %v384, 1.442695
    %v387 = vpow.pop %v386
    %v388 = vmul.f32 %v385, 1.442695
    %v389 = vpow.pop %v388
    %v390 = vsel %vm377, %v387, 0.0
    %391 = vadd.xlane.f32.xlu0 %v390
    %v392 = vpop.xlane.xlu0 %391
    %v393 = vsel %vm377, %v389, 0.0
    %394 = vadd.xlane.f32.xlu0 %v393
    %v395 = vpop.xlane.xlu0 %394
    %v396 = vrcp.pop %v392
    %v397 = vrcp.pop %v395
    %v398 = vmul.f32 %v387, %v396
    %v399 = vmul.f32 %v389, %v397
    %vm400 = vcmask 31744
    %v402 = vsel %vm400, %v398, 0
    %vm404 = vcmask 1043456
    %v405 = vsel %vm404, %v320, 0
    %407 = vmatpush.msra.mxu0 0.0
    %408 = vmatpush.msra.mxu0 0.0
    %409 = vmatpush.msra.mxu0 0.0
    %410 = vmatpush.msra.mxu0 0.0
    %411 = vmatpush.msra.mxu0 0.0
    %412 = vmatpush.msra.mxu0 0.0
    %413 = vmatpush.msra.mxu0 0.0
    %414 = vmatpush.msra.mxu0 0.0
    %415 = vmatpush.msra.mxu0 0.0
    %416 = vmatpush.msra.mxu0 0.0
    %417 = vmatpush.msra.mxu0 0.0
    %418 = vmatpush.msra.mxu0 0.0
    %419 = vmatpush.msra.mxu0 0.0
    %420 = vmatpush.msra.mxu0 0.0
    %421 = vmatpush.msra.mxu0 0.0
    %422 = vmatpush.msra.mxu0 %v405
    %423 = vmatmul.f32.gmra.mxu0 %v402
    %v424 = vpop.f32.mrf.mxu0
    %v425 = vadd.f32 0.0, %v424
    %426 = vdwg.mxu0
    %v428 = vsel %vm400, %v399, 0
    %v430 = vsel %vm404, %v327, 0
    %432 = vmatpush.msra.mxu0 0.0
    %433 = vmatpush.msra.mxu0 0.0
    %434 = vmatpush.msra.mxu0 0.0
    %435 = vmatpush.msra.mxu0 0.0
    %436 = vmatpush.msra.mxu0 0.0
    %437 = vmatpush.msra.mxu0 0.0
    %438 = vmatpush.msra.mxu0 0.0
    %439 = vmatpush.msra.mxu0 0.0
    %440 = vmatpush.msra.mxu0 0.0
    %441 = vmatpush.msra.mxu0 0.0
    %442 = vmatpush.msra.mxu0 0.0
    %443 = vmatpush.msra.mxu0 0.0
    %444 = vmatpush.msra.mxu0 0.0
    %445 = vmatpush.msra.mxu0 0.0
    %446 = vmatpush.msra.mxu0 0.0
    %447 = vmatpush.msra.mxu0 %v430
    %448 = vmatmul.f32.gmra.mxu0 %v428
    %v449 = vpop.f32.mrf.mxu0
    %v450 = vadd.f32 0.0, %v449
    %451 = vdwg.mxu0
    %452 = vst [vmem:[#allocation1] ss:$2 sm:$0xff] %v280
    %v453 = vld.sshfl [vmem:[#allocation1] sm:$0xff pattern:$0x75316420]
    %454 = vrot.lane.b32.xlu0 %v453, 96
    %v455 = vpop.permute.xlu0 %454
    %456 = vst [vmem:[#allocation1] ss:$2 sm:$0xff] %v300
    %v457 = vld.sshfl [vmem:[#allocation1] sm:$0xff pattern:$0x75316420]
    %458 = vrot.lane.b32.xlu0 %v457, 96
    %v459 = vpop.permute.xlu0 %458
    %v460 = vsel %vm328, %v455, 0
    %v462 = vsel %vm328, %v459, 0
    %464 = vmatpush.xpose.msra.mxu0 0.0
    %465 = vmatpush.xpose.msra.mxu0 0.0
    %466 = vmatpush.xpose.msra.mxu0 0.0
    %467 = vmatpush.xpose.msra.mxu0 0.0
    %468 = vmatpush.xpose.msra.mxu0 0.0
    %469 = vmatpush.xpose.msra.mxu0 0.0
    %470 = vmatpush.xpose.msra.mxu0 0.0
    %471 = vmatpush.xpose.msra.mxu0 0.0
    %472 = vmatpush.xpose.msra.mxu0 0.0
    %473 = vmatpush.xpose.msra.mxu0 0.0
    %474 = vmatpush.xpose.msra.mxu0 0.0
    %475 = vmatpush.xpose.msra.mxu0 0.0
    %476 = vmatpush.xpose.msra.mxu0 0.0
    %477 = vmatpush.xpose.msra.mxu0 0.0
    %478 = vmatpush.xpose.msra.mxu0 0.0
    %479 = vmatpush.xpose.msra.mxu0 %v462
    %480 = vmatmul.f32.gmra.mxu0 %v460
    %v481 = vpop.f32.mrf.mxu0
    %v482 = vadd.f32 0.0, %v481
    %483 = vdwg.mxu0
    %484 = vst [vmem:[#allocation1] ss:$2 sm:$0xff] %v323
    %v485 = vld.sshfl [vmem:[#allocation1] sm:$0xff pattern:$0x75316420]
    %486 = vrot.lane.b32.xlu0 %v485, 96
    %v487 = vpop.permute.xlu0 %486
    %488 = vst [vmem:[#allocation1] ss:$2 sm:$0xff] %v325
    %v489 = vld.sshfl [vmem:[#allocation1] sm:$0xff pattern:$0x75316420]
    %490 = vrot.lane.b32.xlu0 %v489, 96
    %v491 = vpop.permute.xlu0 %490
    %v492 = vsel %vm328, %v487, 0
    %v494 = vsel %vm328, %v491, 0
    %496 = vmatpush.xpose.msra.mxu0 0.0
    %497 = vmatpush.xpose.msra.mxu0 0.0
    %498 = vmatpush.xpose.msra.mxu0 0.0
    %499 = vmatpush.xpose.msra.mxu0 0.0
    %500 = vmatpush.xpose.msra.mxu0 0.0
    %501 = vmatpush.xpose.msra.mxu0 0.0
    %502 = vmatpush.xpose.msra.mxu0 0.0
    %503 = vmatpush.xpose.msra.mxu0 0.0
    %504 = vmatpush.xpose.msra.mxu0 0.0
    %505 = vmatpush.xpose.msra.mxu0 0.0
    %506 = vmatpush.xpose.msra.mxu0 0.0
    %507 = vmatpush.xpose.msra.mxu0 0.0
    %508 = vmatpush.xpose.msra.mxu0 0.0
    %509 = vmatpush.xpose.msra.mxu0 0.0
    %510 = vmatpush.xpose.msra.mxu0 0.0
    %511 = vmatpush.xpose.msra.mxu0 %v494
    %512 = vmatmul.f32.gmra.mxu0 %v492
    %v513 = vpop.f32.mrf.mxu0
    %v514 = vadd.f32 0.0, %v513
    %515 = vdwg.mxu0
    %v516 = vsel %vm377, %v482, -inf
    %517 = vmax.xlane.f32.xlu0 %v516
    %v518 = vpop.xlane.xlu0 %517
    %v519 = vsel %vm377, %v514, -inf
    %520 = vmax.xlane.f32.xlu0 %v519
    %v521 = vpop.xlane.xlu0 %520
    %v522 = vsub.f32 %v482, %v518
    %v523 = vsub.f32 %v514, %v521
    %v524 = vmul.f32 %v522, 1.442695
    %v525 = vpow.pop %v524
    %v526 = vmul.f32 %v523, 1.442695
    %v527 = vpow.pop %v526
    %v528 = vsel %vm377, %v525, 0.0
    %529 = vadd.xlane.f32.xlu0 %v528
    %v530 = vpop.xlane.xlu0 %529
    %v531 = vsel %vm377, %v527, 0.0
    %532 = vadd.xlane.f32.xlu0 %v531
    %v533 = vpop.xlane.xlu0 %532
    %v534 = vrcp.pop %v530
    %v535 = vrcp.pop %v533
    %v536 = vmul.f32 %v525, %v534
    %v537 = vmul.f32 %v527, %v535
    %538 = vst [vmem:[#allocation1] ss:$2 sm:$0xff] %v320
    %v539 = vld.sshfl [vmem:[#allocation1] sm:$0xff pattern:$0x75316420]
    %540 = vrot.lane.b32.xlu0 %v539, 96
    %v541 = vpop.permute.xlu0 %540
    %v543 = vsel %vm400, %v536, 0
    %v545 = vsel %vm404, %v541, 0
    %547 = vmatpush.msra.mxu0 0.0
    %548 = vmatpush.msra.mxu0 0.0
    %549 = vmatpush.msra.mxu0 0.0
    %550 = vmatpush.msra.mxu0 0.0
    %551 = vmatpush.msra.mxu0 0.0
    %552 = vmatpush.msra.mxu0 0.0
    %553 = vmatpush.msra.mxu0 0.0
    %554 = vmatpush.msra.mxu0 0.0
    %555 = vmatpush.msra.mxu0 0.0
    %556 = vmatpush.msra.mxu0 0.0
    %557 = vmatpush.msra.mxu0 0.0
    %558 = vmatpush.msra.mxu0 0.0
    %559 = vmatpush.msra.mxu0 0.0
    %560 = vmatpush.msra.mxu0 0.0
    %561 = vmatpush.msra.mxu0 0.0
    %562 = vmatpush.msra.mxu0 %v545
    %563 = vmatmul.f32.gmra.mxu0 %v543
    %v564 = vpop.f32.mrf.mxu0
    %v565 = vadd.f32 0.0, %v564
    %566 = vdwg.mxu0
    %567 = vst [vmem:[#allocation1] ss:$2 sm:$0xff] %v327
    %v568 = vld.sshfl [vmem:[#allocation1] sm:$0xff pattern:$0x75316420]
    %569 = vrot.lane.b32.xlu0 %v568, 96
    %v570 = vpop.permute.xlu0 %569
    %v572 = vsel %vm400, %v537, 0
    %v574 = vsel %vm404, %v570, 0
    %576 = vmatpush.msra.mxu0 0.0
    %577 = vmatpush.msra.mxu0 0.0
    %578 = vmatpush.msra.mxu0 0.0
    %579 = vmatpush.msra.mxu0 0.0
    %580 = vmatpush.msra.mxu0 0.0
    %581 = vmatpush.msra.mxu0 0.0
    %582 = vmatpush.msra.mxu0 0.0
    %583 = vmatpush.msra.mxu0 0.0
    %584 = vmatpush.msra.mxu0 0.0
    %585 = vmatpush.msra.mxu0 0.0
    %586 = vmatpush.msra.mxu0 0.0
    %587 = vmatpush.msra.mxu0 0.0
    %588 = vmatpush.msra.mxu0 0.0
    %589 = vmatpush.msra.mxu0 0.0
    %590 = vmatpush.msra.mxu0 0.0
    %591 = vmatpush.msra.mxu0 %v574
    %592 = vmatmul.f32.gmra.mxu0 %v572
    %v593 = vpop.f32.mrf.mxu0
    %v594 = vadd.f32 0.0, %v593
    %595 = vdwg.mxu0
    %596 = vst [vmem:[#allocation1] ss:$2 sm:$0xff] %v280
    %v597 = vld.sshfl [vmem:[#allocation1] sm:$0xff pattern:$0x75316420]
    %598 = vrot.lane.b32.xlu0 %v597, 64
    %v599 = vpop.permute.xlu0 %598
    %600 = vst [vmem:[#allocation1] ss:$2 sm:$0xff] %v300
    %v601 = vld.sshfl [vmem:[#allocation1] sm:$0xff pattern:$0x75316420]
    %602 = vrot.lane.b32.xlu0 %v601, 64
    %v603 = vpop.permute.xlu0 %602
    %v604 = vsel %vm328, %v599, 0
    %v606 = vsel %vm328, %v603, 0
    %608 = vmatpush.xpose.msra.mxu0 0.0
    %609 = vmatpush.xpose.msra.mxu0 0.0
    %610 = vmatpush.xpose.msra.mxu0 0.0
    %611 = vmatpush.xpose.msra.mxu0 0.0
    %612 = vmatpush.xpose.msra.mxu0 0.0
    %613 = vmatpush.xpose.msra.mxu0 0.0
    %614 = vmatpush.xpose.msra.mxu0 0.0
    %615 = vmatpush.xpose.msra.mxu0 0.0
    %616 = vmatpush.xpose.msra.mxu0 0.0
    %617 = vmatpush.xpose.msra.mxu0 0.0
    %618 = vmatpush.xpose.msra.mxu0 0.0
    %619 = vmatpush.xpose.msra.mxu0 0.0
    %620 = vmatpush.xpose.msra.mxu0 0.0
    %621 = vmatpush.xpose.msra.mxu0 0.0
    %622 = vmatpush.xpose.msra.mxu0 0.0
    %623 = vmatpush.xpose.msra.mxu0 %v606
    %624 = vmatmul.f32.gmra.mxu0 %v604
    %v625 = vpop.f32.mrf.mxu0
    %v626 = vadd.f32 0.0, %v625
    %627 = vdwg.mxu0
    %628 = vst [vmem:[#allocation1] ss:$2 sm:$0xff] %v323
    %v629 = vld.sshfl [vmem:[#allocation1] sm:$0xff pattern:$0x75316420]
    %630 = vrot.lane.b32.xlu0 %v629, 64
    %v631 = vpop.permute.xlu0 %630
    %632 = vst [vmem:[#allocation1] ss:$2 sm:$0xff] %v325
    %v633 = vld.sshfl [vmem:[#allocation1] sm:$0xff pattern:$0x75316420]
    %634 = vrot.lane.b32.xlu0 %v633, 64
    %v635 = vpop.permute.xlu0 %634
    %v636 = vsel %vm328, %v631, 0
    %v638 = vsel %vm328, %v635, 0
    %640 = vmatpush.xpose.msra.mxu0 0.0
    %641 = vmatpush.xpose.msra.mxu0 0.0
    %642 = vmatpush.xpose.msra.mxu0 0.0
    %643 = vmatpush.xpose.msra.mxu0 0.0
    %644 = vmatpush.xpose.msra.mxu0 0.0
    %645 = vmatpush.xpose.msra.mxu0 0.0
    %646 = vmatpush.xpose.msra.mxu0 0.0
    %647 = vmatpush.xpose.msra.mxu0 0.0
    %648 = vmatpush.xpose.msra.mxu0 0.0
    %649 = vmatpush.xpose.msra.mxu0 0.0
    %650 = vmatpush.xpose.msra.mxu0 0.0
    %651 = vmatpush.xpose.msra.mxu0 0.0
    %652 = vmatpush.xpose.msra.mxu0 0.0
    %653 = vmatpush.xpose.msra.mxu0 0.0
    %654 = vmatpush.xpose.msra.mxu0 0.0
    %655 = vmatpush.xpose.msra.mxu0 %v638
    %656 = vmatmul.f32.gmra.mxu0 %v636
    %v657 = vpop.f32.mrf.mxu0
    %v658 = vadd.f32 0.0, %v657
    %659 = vdwg.mxu0
    %v660 = vsel %vm377, %v626, -inf
    %661 = vmax.xlane.f32.xlu0 %v660
    %v662 = vpop.xlane.xlu0 %661
    %v663 = vsel %vm377, %v658, -inf
    %664 = vmax.xlane.f32.xlu0 %v663
    %v665 = vpop.xlane.xlu0 %664
    %v666 = vsub.f32 %v626, %v662
    %v667 = vsub.f32 %v658, %v665
    %v668 = vmul.f32 %v666, 1.442695
    %v669 = vpow.pop %v668
    %v670 = vmul.f32 %v667, 1.442695
    %v671 = vpow.pop %v670
    %v672 = vsel %vm377, %v669, 0.0
    %673 = vadd.xlane.f32.xlu0 %v672
    %v674 = vpop.xlane.xlu0 %673
    %v675 = vsel %vm377, %v671, 0.0
    %676 = vadd.xlane.f32.xlu0 %v675
    %v677 = vpop.xlane.xlu0 %676
    %v678 = vrcp.pop %v674
    %v679 = vrcp.pop %v677
    %v680 = vmul.f32 %v669, %v678
    %v681 = vmul.f32 %v671, %v679
    %682 = vst [vmem:[#allocation1] ss:$2 sm:$0xff] %v320
    %v683 = vld.sshfl [vmem:[#allocation1] sm:$0xff pattern:$0x75316420]
    %684 = vrot.lane.b32.xlu0 %v683, 64
    %v685 = vpop.permute.xlu0 %684
    %v687 = vsel %vm400, %v680, 0
    %v689 = vsel %vm404, %v685, 0
    %691 = vmatpush.msra.mxu0 0.0
    %692 = vmatpush.msra.mxu0 0.0
    %693 = vmatpush.msra.mxu0 0.0
    %694 = vmatpush.msra.mxu0 0.0
    %695 = vmatpush.msra.mxu0 0.0
    %696 = vmatpush.msra.mxu0 0.0
    %697 = vmatpush.msra.mxu0 0.0
    %698 = vmatpush.msra.mxu0 0.0
    %699 = vmatpush.msra.mxu0 0.0
    %700 = vmatpush.msra.mxu0 0.0
    %701 = vmatpush.msra.mxu0 0.0
    %702 = vmatpush.msra.mxu0 0.0
    %703 = vmatpush.msra.mxu0 0.0
    %704 = vmatpush.msra.mxu0 0.0
    %705 = vmatpush.msra.mxu0 0.0
    %706 = vmatpush.msra.mxu0 %v689
    %707 = vmatmul.f32.gmra.mxu0 %v687
    %v708 = vpop.f32.mrf.mxu0
    %v709 = vadd.f32 0.0, %v708
    %710 = vdwg.mxu0
    %711 = vst [vmem:[#allocation1] ss:$2 sm:$0xff] %v327
    %v712 = vld.sshfl [vmem:[#allocation1] sm:$0xff pattern:$0x75316420]
    %713 = vrot.lane.b32.xlu0 %v712, 64
    %v714 = vpop.permute.xlu0 %713
    %v716 = vsel %vm400, %v681, 0
    %v718 = vsel %vm404, %v714, 0
    %720 = vmatpush.msra.mxu0 0.0
    %721 = vmatpush.msra.mxu0 0.0
    %722 = vmatpush.msra.mxu0 0.0
    %723 = vmatpush.msra.mxu0 0.0
    %724 = vmatpush.msra.mxu0 0.0
    %725 = vmatpush.msra.mxu0 0.0
    %726 = vmatpush.msra.mxu0 0.0
    %727 = vmatpush.msra.mxu0 0.0
    %728 = vmatpush.msra.mxu0 0.0
    %729 = vmatpush.msra.mxu0 0.0
    %730 = vmatpush.msra.mxu0 0.0
    %731 = vmatpush.msra.mxu0 0.0
    %732 = vmatpush.msra.mxu0 0.0
    %733 = vmatpush.msra.mxu0 0.0
    %734 = vmatpush.msra.mxu0 0.0
    %735 = vmatpush.msra.mxu0 %v718
    %736 = vmatmul.f32.gmra.mxu0 %v716
    %v737 = vpop.f32.mrf.mxu0
    %v738 = vadd.f32 0.0, %v737
    %739 = vdwg.mxu0
    %740 = vst [vmem:[#allocation1] ss:$2 sm:$0xff] %v280
    %v741 = vld.sshfl [vmem:[#allocation1] sm:$0xff pattern:$0x75316420]
    %742 = vrot.lane.b32.xlu0 %v741, 32
    %v743 = vpop.permute.xlu0 %742
    %744 = vst [vmem:[#allocation1] ss:$2 sm:$0xff] %v300
    %v745 = vld.sshfl [vmem:[#allocation1] sm:$0xff pattern:$0x75316420]
    %746 = vrot.lane.b32.xlu0 %v745, 32
    %v747 = vpop.permute.xlu0 %746
    %v748 = vsel %vm328, %v743, 0
    %v750 = vsel %vm328, %v747, 0
    %752 = vmatpush.xpose.msra.mxu0 0.0
    %753 = vmatpush.xpose.msra.mxu0 0.0
    %754 = vmatpush.xpose.msra.mxu0 0.0
    %755 = vmatpush.xpose.msra.mxu0 0.0
    %756 = vmatpush.xpose.msra.mxu0 0.0
    %757 = vmatpush.xpose.msra.mxu0 0.0
    %758 = vmatpush.xpose.msra.mxu0 0.0
    %759 = vmatpush.xpose.msra.mxu0 0.0
    %760 = vmatpush.xpose.msra.mxu0 0.0
    %761 = vmatpush.xpose.msra.mxu0 0.0
    %762 = vmatpush.xpose.msra.mxu0 0.0
    %763 = vmatpush.xpose.msra.mxu0 0.0
    %764 = vmatpush.xpose.msra.mxu0 0.0
    %765 = vmatpush.xpose.msra.mxu0 0.0
    %766 = vmatpush.xpose.msra.mxu0 0.0
    %767 = vmatpush.xpose.msra.mxu0 %v750
    %768 = vmatmul.f32.gmra.mxu0 %v748
    %v769 = vpop.f32.mrf.mxu0
    %v770 = vadd.f32 0.0, %v769
    %771 = vdwg.mxu0
    %772 = vst [vmem:[#allocation1] ss:$2 sm:$0xff] %v323
    %v773 = vld.sshfl [vmem:[#allocation1] sm:$0xff pattern:$0x75316420]
    %774 = vrot.lane.b32.xlu0 %v773, 32
    %v775 = vpop.permute.xlu0 %774
    %776 = vst [vmem:[#allocation1] ss:$2 sm:$0xff] %v325
    %v777 = vld.sshfl [vmem:[#allocation1] sm:$0xff pattern:$0x75316420]
    %778 = vrot.lane.b32.xlu0 %v777, 32
    %v779 = vpop.permute.xlu0 %778
    %v780 = vsel %vm328, %v775, 0
    %v782 = vsel %vm328, %v779, 0
    %784 = vmatpush.xpose.msra.mxu0 0.0
    %785 = vmatpush.xpose.msra.mxu0 0.0
    %786 = vmatpush.xpose.msra.mxu0 0.0
    %787 = vmatpush.xpose.msra.mxu0 0.0
    %788 = vmatpush.xpose.msra.mxu0 0.0
    %789 = vmatpush.xpose.msra.mxu0 0.0
    %790 = vmatpush.xpose.msra.mxu0 0.0
    %791 = vmatpush.xpose.msra.mxu0 0.0
    %792 = vmatpush.xpose.msra.mxu0 0.0
    %793 = vmatpush.xpose.msra.mxu0 0.0
    %794 = vmatpush.xpose.msra.mxu0 0.0
    %795 = vmatpush.xpose.msra.mxu0 0.0
    %796 = vmatpush.xpose.msra.mxu0 0.0
    %797 = vmatpush.xpose.msra.mxu0 0.0
    %798 = vmatpush.xpose.msra.mxu0 0.0
    %799 = vmatpush.xpose.msra.mxu0 %v782
    %800 = vmatmul.f32.gmra.mxu0 %v780
    %v801 = vpop.f32.mrf.mxu0
    %v802 = vadd.f32 0.0, %v801
    %803 = vdwg.mxu0
    %v804 = vsel %vm377, %v770, -inf
    %805 = vmax.xlane.f32.xlu0 %v804
    %v806 = vpop.xlane.xlu0 %805
    %v807 = vsel %vm377, %v802, -inf
    %808 = vmax.xlane.f32.xlu0 %v807
    %v809 = vpop.xlane.xlu0 %808
    %v810 = vsub.f32 %v770, %v806
    %v811 = vsub.f32 %v802, %v809
    %v812 = vmul.f32 %v810, 1.442695
    %v813 = vpow.pop %v812
    %v814 = vmul.f32 %v811, 1.442695
    %v815 = vpow.pop %v814
    %v816 = vsel %vm377, %v813, 0.0
    %817 = vadd.xlane.f32.xlu0 %v816
    %v818 = vpop.xlane.xlu0 %817
    %v819 = vsel %vm377, %v815, 0.0
    %820 = vadd.xlane.f32.xlu0 %v819
    %v821 = vpop.xlane.xlu0 %820
    %v822 = vrcp.pop %v818
    %v823 = vrcp.pop %v821
    %v824 = vmul.f32 %v813, %v822
    %v825 = vmul.f32 %v815, %v823
    %826 = vst [vmem:[#allocation1] ss:$2 sm:$0xff] %v320
    %v827 = vld.sshfl [vmem:[#allocation1] sm:$0xff pattern:$0x75316420]
    %828 = vrot.lane.b32.xlu0 %v827, 32
    %v829 = vpop.permute.xlu0 %828
    %v831 = vsel %vm400, %v824, 0
    %v833 = vsel %vm404, %v829, 0
    %835 = vmatpush.msra.mxu0 0.0
    %836 = vmatpush.msra.mxu0 0.0
    %837 = vmatpush.msra.mxu0 0.0
    %838 = vmatpush.msra.mxu0 0.0
    %839 = vmatpush.msra.mxu0 0.0
    %840 = vmatpush.msra.mxu0 0.0
    %841 = vmatpush.msra.mxu0 0.0
    %842 = vmatpush.msra.mxu0 0.0
    %843 = vmatpush.msra.mxu0 0.0
    %844 = vmatpush.msra.mxu0 0.0
    %845 = vmatpush.msra.mxu0 0.0
    %846 = vmatpush.msra.mxu0 0.0
    %847 = vmatpush.msra.mxu0 0.0
    %848 = vmatpush.msra.mxu0 0.0
    %849 = vmatpush.msra.mxu0 0.0
    %850 = vmatpush.msra.mxu0 %v833
    %851 = vmatmul.f32.gmra.mxu0 %v831
    %v852 = vpop.f32.mrf.mxu0
    %v853 = vadd.f32 0.0, %v852
    %854 = vdwg.mxu0
    %855 = vst [vmem:[#allocation1] ss:$2 sm:$0xff] %v327
    %v856 = vld.sshfl [vmem:[#allocation1] sm:$0xff pattern:$0x75316420]
    %857 = vrot.lane.b32.xlu0 %v856, 32
    %v858 = vpop.permute.xlu0 %857
    %v860 = vsel %vm400, %v825, 0
    %v862 = vsel %vm404, %v858, 0
    %864 = vmatpush.msra.mxu0 0.0
    %865 = vmatpush.msra.mxu0 0.0
    %866 = vmatpush.msra.mxu0 0.0
    %867 = vmatpush.msra.mxu0 0.0
    %868 = vmatpush.msra.mxu0 0.0
    %869 = vmatpush.msra.mxu0 0.0
    %870 = vmatpush.msra.mxu0 0.0
    %871 = vmatpush.msra.mxu0 0.0
    %872 = vmatpush.msra.mxu0 0.0
    %873 = vmatpush.msra.mxu0 0.0
    %874 = vmatpush.msra.mxu0 0.0
    %875 = vmatpush.msra.mxu0 0.0
    %876 = vmatpush.msra.mxu0 0.0
    %877 = vmatpush.msra.mxu0 0.0
    %878 = vmatpush.msra.mxu0 0.0
    %879 = vmatpush.msra.mxu0 %v862
    %880 = vmatmul.f32.gmra.mxu0 %v860
    %v881 = vpop.f32.mrf.mxu0
    %v882 = vadd.f32 0.0, %v881
    %883 = vdwg.mxu0
    %886 = vrot.lane.b32.xlu0 %v565, 32
    %v887 = vpop.permute.xlu0 %886
    %888 = vrot.lane.b32.xlu0 %v594, 32
    %v889 = vpop.permute.xlu0 %888
    %894 = vrot.lane.b32.xlu0 %v709, 64
    %v895 = vpop.permute.xlu0 %894
    %896 = vrot.lane.b32.xlu0 %v738, 64
    %v897 = vpop.permute.xlu0 %896
    %902 = vrot.lane.b32.xlu0 %v853, 96
    %v903 = vpop.permute.xlu0 %902
    %904 = vrot.lane.b32.xlu0 %v882, 96
    %v905 = vpop.permute.xlu0 %904
    %v908 = vsel %vm328, %v425, %v887
    %v909 = vsel %vm328, %v450, %v889
    %vm910 = vcmask 523264
    %v911 = vsel %vm910, %v908, %v895
    %v912 = vsel %vm910, %v909, %v897
    %vm913 = vcmask 785408
    %v914 = vsel %vm913, %v911, %v903
    %v915 = vsel %vm913, %v912, %v905
    %918 = vst [vmem:[#allocation1] ss:$2 sm:$0xff] %v914
    %s919 = scalar_lea.vmem [#allocation1], 1
    %920 = vst [vmem:[%s919] ss:$2 sm:$0xff] %v915
    %v921 = vld.sshfl [vmem:[#allocation1] sm:$0xff pattern:$0x75316420]
    %923 = vmatpush.msra.mxu0 %v173
    %924 = vmatpush.msra.mxu0 %v172
    %925 = vmatpush.msra.mxu0 %v171
    %926 = vmatpush.msra.mxu0 %v170
    %927 = vmatpush.msra.mxu0 %v169
    %928 = vmatpush.msra.mxu0 %v168
    %929 = vmatpush.msra.mxu0 %v167
    %930 = vmatpush.msra.mxu0 %v166
    %931 = vmatpush.msra.mxu0 %v165
    %932 = vmatpush.msra.mxu0 %v164
    %933 = vmatpush.msra.mxu0 %v163
    %934 = vmatpush.msra.mxu0 %v162
    %935 = vmatpush.msra.mxu0 %v161
    %936 = vmatpush.msra.mxu0 %v160
    %937 = vmatpush.msra.mxu0 %v159
    %938 = vmatpush.msra.mxu0 %v158
    %939 = vmatmul.f32.gmra.mxu0 %v921
    %v940 = vpop.f32.mrf.mxu0
    %v941 = vadd.f32 %v240, %v940
    %942 = vdwg.mxu0
    %v944 = vrot.slane %v941, 4
    %v946 = vadd.f32 %v108, %v941
    %v947 = vadd.f32 %v109, %v944
    %950 = vst [vmem:[#allocation1] ss:$2 sm:$0xff] %v946
    %s951 = scalar_lea.vmem [#allocation1], 1
    %952 = vst [vmem:[%s951] ss:$2 sm:$0xff] %v947
    %v953 = vld.sshfl [vmem:[#allocation1] sm:$0xff pattern:$0x75316420]
    %955 = vadd.xlane.f32.xlu0 %v953
    %v956 = vpop.xlane.xlu0 %955
    %v957 = vrcp.pop 128.0
    %v958 = vmul.f32 128.0, %v957
    %v959 = vsub.f32 1.0, %v958
    %v960 = vmul.f32 %v957, %v959
    %v961 = vadd.f32 %v957, %v960
    %vm962 = vweird.f32 %v957
    %v963 = vsel %vm962, %v957, %v961
    %v964 = vmul.f32 %v956, %v963
    %v967 = vunpack.c.l.s4 839922192
    %v968 = vunpack.c.0.s8 %v967
    %v969 = vperm.slane %v964, %v968
    %v971 = vunpack.c.l.s4 1985246804
    %v972 = vunpack.c.0.s8 %v971
    %v973 = vperm.slane %v964, %v972
    %v976 = vsub.f32 %v946, %v969
    %v977 = vsub.f32 %v947, %v973
    %v978 = vmul.f32 %v976, %v976
    %v979 = vmul.f32 %v977, %v977
    %982 = vst [vmem:[#allocation1] ss:$2 sm:$0xff] %v978
    %s983 = scalar_lea.vmem [#allocation1], 1
    %984 = vst [vmem:[%s983] ss:$2 sm:$0xff] %v979
    %v985 = vld.sshfl [vmem:[#allocation1] sm:$0xff pattern:$0x75316420]
    %987 = vadd.xlane.f32.xlu0 %v985
    %v988 = vpop.xlane.xlu0 %987
    %v989 = vmul.f32 %v988, %v963
    %v990 = vadd.f32 %v989, 1e-05
    %v991 = vrsqrt.pop %v990
    %v992 = vmul.f32 %v991, %v990
    %v993 = vmul.f32 %v992, %v991
    %v994 = vmul.f32 0.5, %v993
    %v995 = vsub.f32 1.5, %v994
    %v996 = vmul.f32 %v991, %v995
    %vm997 = vweird.f32 %v990
    %vm998 = vweird.f32 %v991
    %vm999 = vmor %vm997, %vm998
    %v1000 = vsel %vm999, %v991, %v996
    %v1003 = vunpack.c.l.s4 839922192
    %v1004 = vunpack.c.0.s8 %v1003
    %v1005 = vperm.slane %v1000, %v1004
    %v1007 = vunpack.c.l.s4 1985246804
    %v1008 = vunpack.c.0.s8 %v1007
    %v1009 = vperm.slane %v1000, %v1008
    %v1012 = vmul.f32 %v976, %v1005
    %v1013 = vmul.f32 %v977, %v1009
    %v1015 = vrot.slane %v244, 4
    %v1017 = vmul.f32 %v1012, %v244
    %v1018 = vmul.f32 %v1013, %v1015
    %v1020 = vrot.slane %v245, 4
    %v1022 = vadd.f32 %v1017, %v245
    %v1023 = vadd.f32 %v1018, %v1020
    %v1025 = vperm.slane %v242, 0
    %v1026 = vperm.slane %v242, 1
    %1031 = vst [vmem:[#allocation1] ss:$2 sm:$0xff] %v1022
    %s1032 = scalar_lea.vmem [#allocation1], 1
    %1033 = vst [vmem:[%s1032] ss:$2 sm:$0xff] %v1023
    %v1034 = vld.sshfl [vmem:[#allocation1] sm:$0xff pattern:$0x75316420]
    %1036 = vmatpush.msra.mxu0 %v204
    %1037 = vmatpush.msra.mxu0 %v202
    %1038 = vmatpush.msra.mxu0 %v200
    %1039 = vmatpush.msra.mxu0 %v198
    %1040 = vmatpush.msra.mxu0 %v196
    %1041 = vmatpush.msra.mxu0 %v194
    %1042 = vmatpush.msra.mxu0 %v192
    %1043 = vmatpush.msra.mxu0 %v190
    %1044 = vmatpush.msra.mxu0 %v188
    %1045 = vmatpush.msra.mxu0 %v186
    %1046 = vmatpush.msra.mxu0 %v184
    %1047 = vmatpush.msra.mxu0 %v182
    %1048 = vmatpush.msra.mxu0 %v180
    %1049 = vmatpush.msra.mxu0 %v178
    %1050 = vmatpush.msra.mxu0 %v176
    %1051 = vmatpush.msra.mxu0 %v174
    %1052 = vmatmul.f32.gmra.mxu0 %v1034
    %v1053 = vpop.f32.mrf.mxu0
    %v1054 = vadd.f32 %v1025, %v1053
    %1055 = vdwg.mxu0
    %1056 = vmatpush.msra.mxu0 %v205
    %1057 = vmatpush.msra.mxu0 %v203
    %1058 = vmatpush.msra.mxu0 %v201
    %1059 = vmatpush.msra.mxu0 %v199
    %1060 = vmatpush.msra.mxu0 %v197
    %1061 = vmatpush.msra.mxu0 %v195
    %1062 = vmatpush.msra.mxu0 %v193
    %1063 = vmatpush.msra.mxu0 %v191
    %1064 = vmatpush.msra.mxu0 %v189
    %1065 = vmatpush.msra.mxu0 %v187
    %1066 = vmatpush.msra.mxu0 %v185
    %1067 = vmatpush.msra.mxu0 %v183
    %1068 = vmatpush.msra.mxu0 %v181
    %1069 = vmatpush.msra.mxu0 %v179
    %1070 = vmatpush.msra.mxu0 %v177
    %1071 = vmatpush.msra.mxu0 %v175
    %1072 = vmatmul.f32.gmra.mxu0 %v1034
    %v1073 = vpop.f32.mrf.mxu0
    %v1074 = vadd.f32 %v1026, %v1073
    %1075 = vdwg.mxu0
    %v1076 = vmax.f32 %v1054, 0.0
    %v1077 = vmax.f32 %v1074, 0.0
    %1078 = vmatpush.msra.mxu0 %v221
    %1079 = vmatpush.msra.mxu0 %v220
    %1080 = vmatpush.msra.mxu0 %v219
    %1081 = vmatpush.msra.mxu0 %v218
    %1082 = vmatpush.msra.mxu0 %v217
    %1083 = vmatpush.msra.mxu0 %v216
    %1084 = vmatpush.msra.mxu0 %v215
    %1085 = vmatpush.msra.mxu0 %v214
    %1086 = vmatpush.msra.mxu0 %v213
    %1087 = vmatpush.msra.mxu0 %v212
    %1088 = vmatpush.msra.mxu0 %v211
    %1089 = vmatpush.msra.mxu0 %v210
    %1090 = vmatpush.msra.mxu0 %v209
    %1091 = vmatpush.msra.mxu0 %v208
    %1092 = vmatpush.msra.mxu0 %v207
    %1093 = vmatpush.msra.mxu0 %v206
    %1094 = vmatmul.f32.gmra.mxu0 %v1076
    %v1095 = vpop.f32.mrf.mxu0
    %v1096 = vadd.f32 %v243, %v1095
    %1097 = vdwg.mxu0
    %1098 = vmatpush.msra.mxu0 %v237
    %1099 = vmatpush.msra.mxu0 %v236
    %1100 = vmatpush.msra.mxu0 %v235
    %1101 = vmatpush.msra.mxu0 %v234
    %1102 = vmatpush.msra.mxu0 %v233
    %1103 = vmatpush.msra.mxu0 %v232
    %1104 = vmatpush.msra.mxu0 %v231
    %1105 = vmatpush.msra.mxu0 %v230
    %1106 = vmatpush.msra.mxu0 %v229
    %1107 = vmatpush.msra.mxu0 %v228
    %1108 = vmatpush.msra.mxu0 %v227
    %1109 = vmatpush.msra.mxu0 %v226
    %1110 = vmatpush.msra.mxu0 %v225
    %1111 = vmatpush.msra.mxu0 %v224
    %1112 = vmatpush.msra.mxu0 %v223
    %1113 = vmatpush.msra.mxu0 %v222
    %1114 = vmatmul.f32.gmra.mxu0 %v1077
    %v1115 = vpop.f32.mrf.mxu0
    %v1116 = vadd.f32 %v1096, %v1115
    %1117 = vdwg.mxu0
    %v1119 = vrot.slane %v1116, 4
    %v1121 = vadd.f32 %v1022, %v1116
    %v1122 = vadd.f32 %v1023, %v1119
    %1125 = vst [vmem:[#allocation1] ss:$2 sm:$0xff] %v1121
    %s1126 = scalar_lea.vmem [#allocation1], 1
    %1127 = vst [vmem:[%s1126] ss:$2 sm:$0xff] %v1122
    %v1128 = vld.sshfl [vmem:[#allocation1] sm:$0xff pattern:$0x75316420]
    %1130 = vadd.xlane.f32.xlu0 %v1128
    %v1131 = vpop.xlane.xlu0 %1130
    %v1132 = vmul.f32 %v1131, %v963
    %v1135 = vunpack.c.l.s4 839922192
    %v1136 = vunpack.c.0.s8 %v1135
    %v1137 = vperm.slane %v1132, %v1136
    %v1139 = vunpack.c.l.s4 1985246804
    %v1140 = vunpack.c.0.s8 %v1139
    %v1141 = vperm.slane %v1132, %v1140
    %v1144 = vsub.f32 %v1121, %v1137
    %v1145 = vsub.f32 %v1122, %v1141
    %v1146 = vmul.f32 %v1144, %v1144
    %v1147 = vmul.f32 %v1145, %v1145
    %1150 = vst [vmem:[#allocation1] ss:$2 sm:$0xff] %v1146
    %s1151 = scalar_lea.vmem [#allocation1], 1
    %1152 = vst [vmem:[%s1151] ss:$2 sm:$0xff] %v1147
    %v1153 = vld.sshfl [vmem:[#allocation1] sm:$0xff pattern:$0x75316420]
    %1155 = vadd.xlane.f32.xlu0 %v1153
    %v1156 = vpop.xlane.xlu0 %1155
    %v1157 = vmul.f32 %v1156, %v963
    %v1158 = vadd.f32 %v1157, 1e-05
    %v1159 = vrsqrt.pop %v1158
    %v1160 = vmul.f32 %v1159, %v1158
    %v1161 = vmul.f32 %v1160, %v1159
    %v1162 = vmul.f32 0.5, %v1161
    %v1163 = vsub.f32 1.5, %v1162
    %v1164 = vmul.f32 %v1159, %v1163
    %vm1165 = vweird.f32 %v1158
    %vm1166 = vweird.f32 %v1159
    %vm1167 = vmor %vm1165, %vm1166
    %v1168 = vsel %vm1167, %v1159, %v1164
    %v1171 = vunpack.c.l.s4 839922192
    %v1172 = vunpack.c.0.s8 %v1171
    %v1173 = vperm.slane %v1168, %v1172
    %v1175 = vunpack.c.l.s4 1985246804
    %v1176 = vunpack.c.0.s8 %v1175
    %v1177 = vperm.slane %v1168, %v1176
    %v1180 = vmul.f32 %v1144, %v1173
    %v1181 = vmul.f32 %v1145, %v1177
    %v1183 = vrot.slane %v246, 4
    %v1185 = vmul.f32 %v1180, %v246
    %v1186 = vmul.f32 %v1181, %v1183
    %v1188 = vrot.slane %v247, 4
    %v1190 = vadd.f32 %v1185, %v247
    %v1191 = vadd.f32 %v1186, %v1188
    %v1192 = vld [vmem:[#allocation5 + $0x30] sm:$0xff]
    %v1193 = vld [vmem:[#allocation5 + $0x38] sm:$0xff]
    %v1194 = vld [vmem:[#allocation5 + $0x40] sm:$0xff]
    %v1195 = vld [vmem:[#allocation5 + $0x98] sm:$0xff]
    %v1196 = vld [vmem:[#allocation5 + $0xa0] sm:$0xff]
    %v1197 = vld [vmem:[#allocation5 + $0xa8] sm:$0xff]
    %v1198 = vld [vmem:[#allocation5 + $0x100] sm:$0xff]
    %v1199 = vld [vmem:[#allocation5 + $0x108] sm:$0xff]
    %v1200 = vld [vmem:[#allocation5 + $0x110] sm:$0xff]
    %v1201 = vld [vmem:[#allocation5 + $0x168] sm:$0xff]
    %v1202 = vld [vmem:[#allocation5 + $0x170] sm:$0xff]
    %v1203 = vld [vmem:[#allocation5 + $0x178] sm:$0xff]
    %v1204 = vld [vmem:[#allocation5 + $0x1d0] sm:$0xff]
    %v1205 = vld [vmem:[#allocation5 + $0x1d8] sm:$0xff]
    %v1206 = vld [vmem:[#allocation5 + $0x1e0] sm:$0xff]
    %v1207 = vld [vmem:[#allocation5 + $0x238] sm:$0xff]
    %v1208 = vld [vmem:[#allocation5 + $0x240] sm:$0xff]
    %v1209 = vld [vmem:[#allocation5 + $0x248] sm:$0xff]
    %v1210 = vld [vmem:[#allocation5 + $0x2a0] sm:$0xff]
    %v1211 = vld [vmem:[#allocation5 + $0x2a8] sm:$0xff]
    %v1212 = vld [vmem:[#allocation5 + $0x2b0] sm:$0xff]
    %v1213 = vld [vmem:[#allocation5 + $0x308] sm:$0xff]
    %v1214 = vld [vmem:[#allocation5 + $0x310] sm:$0xff]
    %v1215 = vld [vmem:[#allocation5 + $0x318] sm:$0xff]
    %v1216 = vld [vmem:[#allocation5 + $0x370] sm:$0xff]
    %v1217 = vld [vmem:[#allocation5 + $0x378] sm:$0xff]
    %v1218 = vld [vmem:[#allocation5 + $0x380] sm:$0xff]
    %v1219 = vld [vmem:[#allocation5 + $0x3d8] sm:$0xff]
    %v1220 = vld [vmem:[#allocation5 + $0x3e0] sm:$0xff]
    %v1221 = vld [vmem:[#allocation5 + $0x3e8] sm:$0xff]
    %v1222 = vld [vmem:[#allocation5 + $0x440] sm:$0xff]
    %v1223 = vld [vmem:[#allocation5 + $0x448] sm:$0xff]
    %v1224 = vld [vmem:[#allocation5 + $0x450] sm:$0xff]
    %v1225 = vld [vmem:[#allocation5 + $0x4a8] sm:$0xff]
    %v1226 = vld [vmem:[#allocation5 + $0x4b0] sm:$0xff]
    %v1227 = vld [vmem:[#allocation5 + $0x4b8] sm:$0xff]
    %v1228 = vld [vmem:[#allocation5 + $0x510] sm:$0xff]
    %v1229 = vld [vmem:[#allocation5 + $0x518] sm:$0xff]
    %v1230 = vld [vmem:[#allocation5 + $0x520] sm:$0xff]
    %v1231 = vld [vmem:[#allocation5 + $0x578] sm:$0xff]
    %v1232 = vld [vmem:[#allocation5 + $0x580] sm:$0xff]
    %v1233 = vld [vmem:[#allocation5 + $0x588] sm:$0xff]
    %v1234 = vld [vmem:[#allocation5 + $0x5e0] sm:$0xff]
    %v1235 = vld [vmem:[#allocation5 + $0x5e8] sm:$0xff]
    %v1236 = vld [vmem:[#allocation5 + $0x5f0] sm:$0xff]
    %v1237 = vld [vmem:[#allocation5 + $0x648] sm:$0xff]
    %v1238 = vld [vmem:[#allocation5 + $0x650] sm:$0xff]
    %v1239 = vld [vmem:[#allocation5 + $0x658] sm:$0xff]
    %v1240 = vld [vmem:[#allocation5 + $0x48] sm:$0xff]
    %v1241 = vld [vmem:[#allocation5 + $0xb0] sm:$0xff]
    %v1242 = vld [vmem:[#allocation5 + $0x118] sm:$0xff]
    %v1243 = vld [vmem:[#allocation5 + $0x180] sm:$0xff]
    %v1244 = vld [vmem:[#allocation5 + $0x1e8] sm:$0xff]
    %v1245 = vld [vmem:[#allocation5 + $0x250] sm:$0xff]
    %v1246 = vld [vmem:[#allocation5 + $0x2b8] sm:$0xff]
    %v1247 = vld [vmem:[#allocation5 + $0x320] sm:$0xff]
    %v1248 = vld [vmem:[#allocation5 + $0x388] sm:$0xff]
    %v1249 = vld [vmem:[#allocation5 + $0x3f0] sm:$0xff]
    %v1250 = vld [vmem:[#allocation5 + $0x458] sm:$0xff]
    %v1251 = vld [vmem:[#allocation5 + $0x4c0] sm:$0xff]
    %v1252 = vld [vmem:[#allocation5 + $0x528] sm:$0xff]
    %v1253 = vld [vmem:[#allocation5 + $0x590] sm:$0xff]
    %v1254 = vld [vmem:[#allocation5 + $0x5f8] sm:$0xff]
    %v1255 = vld [vmem:[#allocation5 + $0x660] sm:$0xff]
    %v1256 = vld [vmem:[#allocation5 + $0x50] sm:$0xff]
    %v1257 = vld [vmem:[#allocation5 + $0x58] sm:$0xff]
    %v1258 = vld [vmem:[#allocation5 + $0xb8] sm:$0xff]
    %v1259 = vld [vmem:[#allocation5 + $0xc0] sm:$0xff]
    %v1260 = vld [vmem:[#allocation5 + $0x120] sm:$0xff]
    %v1261 = vld [vmem:[#allocation5 + $0x128] sm:$0xff]
    %v1262 = vld [vmem:[#allocation5 + $0x188] sm:$0xff]
    %v1263 = vld [vmem:[#allocation5 + $0x190] sm:$0xff]
    %v1264 = vld [vmem:[#allocation5 + $0x1f0] sm:$0xff]
    %v1265 = vld [vmem:[#allocation5 + $0x1f8] sm:$0xff]
    %v1266 = vld [vmem:[#allocation5 + $0x258] sm:$0xff]
    %v1267 = vld [vmem:[#allocation5 + $0x260] sm:$0xff]
    %v1268 = vld [vmem:[#allocation5 + $0x2c0] sm:$0xff]
    %v1269 = vld [vmem:[#allocation5 + $0x2c8] sm:$0xff]
    %v1270 = vld [vmem:[#allocation5 + $0x328] sm:$0xff]
    %v1271 = vld [vmem:[#allocation5 + $0x330] sm:$0xff]
    %v1272 = vld [vmem:[#allocation5 + $0x390] sm:$0xff]
    %v1273 = vld [vmem:[#allocation5 + $0x398] sm:$0xff]
    %v1274 = vld [vmem:[#allocation5 + $0x3f8] sm:$0xff]
    %v1275 = vld [vmem:[#allocation5 + $0x400] sm:$0xff]
    %v1276 = vld [vmem:[#allocation5 + $0x460] sm:$0xff]
    %v1277 = vld [vmem:[#allocation5 + $0x468] sm:$0xff]
    %v1278 = vld [vmem:[#allocation5 + $0x4c8] sm:$0xff]
    %v1279 = vld [vmem:[#allocation5 + $0x4d0] sm:$0xff]
    %v1280 = vld [vmem:[#allocation5 + $0x530] sm:$0xff]
    %v1281 = vld [vmem:[#allocation5 + $0x538] sm:$0xff]
    %v1282 = vld [vmem:[#allocation5 + $0x598] sm:$0xff]
    %v1283 = vld [vmem:[#allocation5 + $0x5a0] sm:$0xff]
    %v1284 = vld [vmem:[#allocation5 + $0x600] sm:$0xff]
    %v1285 = vld [vmem:[#allocation5 + $0x608] sm:$0xff]
    %v1286 = vld [vmem:[#allocation5 + $0x668] sm:$0xff]
    %v1287 = vld [vmem:[#allocation5 + $0x670] sm:$0xff]
    %v1288 = vld [vmem:[#allocation7 + $0x100] sm:$0xff]
    %v1289 = vld [vmem:[#allocation7 + $0x108] sm:$0xff]
    %v1290 = vld [vmem:[#allocation7 + $0x110] sm:$0xff]
    %v1291 = vld [vmem:[#allocation7 + $0x118] sm:$0xff]
    %v1292 = vld [vmem:[#allocation7 + $0x120] sm:$0xff]
    %v1293 = vld [vmem:[#allocation7 + $0x128] sm:$0xff]
    %v1294 = vld [vmem:[#allocation7 + $0x130] sm:$0xff]
    %v1295 = vld [vmem:[#allocation7 + $0x138] sm:$0xff]
    %v1296 = vld [vmem:[#allocation7 + $0x140] sm:$0xff]
    %v1297 = vld [vmem:[#allocation7 + $0x148] sm:$0xff]
    %v1298 = vld [vmem:[#allocation7 + $0x150] sm:$0xff]
    %v1299 = vld [vmem:[#allocation7 + $0x158] sm:$0xff]
    %v1300 = vld [vmem:[#allocation7 + $0x160] sm:$0xff]
    %v1301 = vld [vmem:[#allocation7 + $0x168] sm:$0xff]
    %v1302 = vld [vmem:[#allocation7 + $0x170] sm:$0xff]
    %v1303 = vld [vmem:[#allocation7 + $0x178] sm:$0xff]
    %v1304 = vld [vmem:[#allocation7 + $0x180] sm:$0xff]
    %v1305 = vld [vmem:[#allocation7 + $0x188] sm:$0xff]
    %v1306 = vld [vmem:[#allocation7 + $0x190] sm:$0xff]
    %v1307 = vld [vmem:[#allocation7 + $0x198] sm:$0xff]
    %v1308 = vld [vmem:[#allocation7 + $0x1a0] sm:$0xff]
    %v1309 = vld [vmem:[#allocation7 + $0x1a8] sm:$0xff]
    %v1310 = vld [vmem:[#allocation7 + $0x1b0] sm:$0xff]
    %v1311 = vld [vmem:[#allocation7 + $0x1b8] sm:$0xff]
    %v1312 = vld [vmem:[#allocation7 + $0x1c0] sm:$0xff]
    %v1313 = vld [vmem:[#allocation7 + $0x1c8] sm:$0xff]
    %v1314 = vld [vmem:[#allocation7 + $0x1d0] sm:$0xff]
    %v1315 = vld [vmem:[#allocation7 + $0x1d8] sm:$0xff]
    %v1316 = vld [vmem:[#allocation7 + $0x1e0] sm:$0xff]
    %v1317 = vld [vmem:[#allocation7 + $0x1e8] sm:$0xff]
    %v1318 = vld [vmem:[#allocation7 + $0x1f0] sm:$0xff]
    %v1319 = vld [vmem:[#allocation7 + $0x1f8] sm:$0xff]
    %s1320 = scalar_lea.vmem [#allocation2], 31
    %v1321 = vld [vmem:[%s1320] ss:$8 sm:$0x7]
    %v1322 = vld [vmem:[#allocation2 + $0x30] ss:$0 sm:$0xff]
    %s1323 = scalar_lea.vmem [#allocation2], 49
    %v1324 = vld [vmem:[%s1323] ss:$8 sm:$0x3]
    %v1325 = vld [vmem:[#allocation2 + $0x32] ss:$0 sm:$0xff]
    %v1326 = vld [vmem:[#allocation2 + $0x33] ss:$0 sm:$0xff]
    %v1327 = vld [vmem:[#allocation2 + $0x34] ss:$0 sm:$0xff]
    %v1328 = vld [vmem:[#allocation2 + $0x35] ss:$0 sm:$0xff]
    %v1329 = vld [vmem:[#allocation2 + $0x36] ss:$0 sm:$0xff]
    %v1331 = vperm.slane %v1321, 0
    %v1332 = vperm.slane %v1321, 1
    %v1333 = vperm.slane %v1321, 2
    %1339 = vst [vmem:[#allocation1] ss:$2 sm:$0xff] %v1190
    %s1340 = scalar_lea.vmem [#allocation1], 1
    %1341 = vst [vmem:[%s1340] ss:$2 sm:$0xff] %v1191
    %v1342 = vld.sshfl [vmem:[#allocation1] sm:$0xff pattern:$0x75316420]
    %1344 = vmatpush.msra.mxu0 %v1237
    %1345 = vmatpush.msra.mxu0 %v1234
    %1346 = vmatpush.msra.mxu0 %v1231
    %1347 = vmatpush.msra.mxu0 %v1228
    %1348 = vmatpush.msra.mxu0 %v1225
    %1349 = vmatpush.msra.mxu0 %v1222
    %1350 = vmatpush.msra.mxu0 %v1219
    %1351 = vmatpush.msra.mxu0 %v1216
    %1352 = vmatpush.msra.mxu0 %v1213
    %1353 = vmatpush.msra.mxu0 %v1210
    %1354 = vmatpush.msra.mxu0 %v1207
    %1355 = vmatpush.msra.mxu0 %v1204
    %1356 = vmatpush.msra.mxu0 %v1201
    %1357 = vmatpush.msra.mxu0 %v1198
    %1358 = vmatpush.msra.mxu0 %v1195
    %1359 = vmatpush.msra.mxu0 %v1192
    %1360 = vmatmul.f32.gmra.mxu0 %v1342
    %v1361 = vpop.f32.mrf.mxu0
    %v1362 = vadd.f32 %v1331, %v1361
    %1363 = vdwg.mxu0
    %1364 = vmatpush.msra.mxu0 %v1238
    %1365 = vmatpush.msra.mxu0 %v1235
    %1366 = vmatpush.msra.mxu0 %v1232
    %1367 = vmatpush.msra.mxu0 %v1229
    %1368 = vmatpush.msra.mxu0 %v1226
    %1369 = vmatpush.msra.mxu0 %v1223
    %1370 = vmatpush.msra.mxu0 %v1220
    %1371 = vmatpush.msra.mxu0 %v1217
    %1372 = vmatpush.msra.mxu0 %v1214
    %1373 = vmatpush.msra.mxu0 %v1211
    %1374 = vmatpush.msra.mxu0 %v1208
    %1375 = vmatpush.msra.mxu0 %v1205
    %1376 = vmatpush.msra.mxu0 %v1202
    %1377 = vmatpush.msra.mxu0 %v1199
    %1378 = vmatpush.msra.mxu0 %v1196
    %1379 = vmatpush.msra.mxu0 %v1193
    %1380 = vmatmul.f32.gmra.mxu0 %v1342
    %v1381 = vpop.f32.mrf.mxu0
    %v1382 = vadd.f32 %v1332, %v1381
    %1383 = vdwg.mxu0
    %1384 = vmatpush.msra.mxu0 %v1239
    %1385 = vmatpush.msra.mxu0 %v1236
    %1386 = vmatpush.msra.mxu0 %v1233
    %1387 = vmatpush.msra.mxu0 %v1230
    %1388 = vmatpush.msra.mxu0 %v1227
    %1389 = vmatpush.msra.mxu0 %v1224
    %1390 = vmatpush.msra.mxu0 %v1221
    %1391 = vmatpush.msra.mxu0 %v1218
    %1392 = vmatpush.msra.mxu0 %v1215
    %1393 = vmatpush.msra.mxu0 %v1212
    %1394 = vmatpush.msra.mxu0 %v1209
    %1395 = vmatpush.msra.mxu0 %v1206
    %1396 = vmatpush.msra.mxu0 %v1203
    %1397 = vmatpush.msra.mxu0 %v1200
    %1398 = vmatpush.msra.mxu0 %v1197
    %1399 = vmatpush.msra.mxu0 %v1194
    %1400 = vmatmul.f32.gmra.mxu0 %v1342
    %v1401 = vpop.f32.mrf.mxu0
    %v1402 = vadd.f32 %v1333, %v1401
    %1403 = vdwg.mxu0
    %v1405 = vrot.slane %v1362, 4
    %v1407 = vrot.slane %v1382, 4
    %v1409 = vrot.slane %v1402, 4
    %v1410 = vsel %vm328, %v1362, 0
    %v1412 = vsel %vm328, %v1382, 0
    %1414 = vmatpush.xpose.msra.mxu0 0.0
    %1415 = vmatpush.xpose.msra.mxu0 0.0
    %1416 = vmatpush.xpose.msra.mxu0 0.0
    %1417 = vmatpush.xpose.msra.mxu0 0.0
    %1418 = vmatpush.xpose.msra.mxu0 0.0
    %1419 = vmatpush.xpose.msra.mxu0 0.0
    %1420 = vmatpush.xpose.msra.mxu0 0.0
    %1421 = vmatpush.xpose.msra.mxu0 0.0
    %1422 = vmatpush.xpose.msra.mxu0 0.0
    %1423 = vmatpush.xpose.msra.mxu0 0.0
    %1424 = vmatpush.xpose.msra.mxu0 0.0
    %1425 = vmatpush.xpose.msra.mxu0 0.0
    %1426 = vmatpush.xpose.msra.mxu0 0.0
    %1427 = vmatpush.xpose.msra.mxu0 0.0
    %1428 = vmatpush.xpose.msra.mxu0 0.0
    %1429 = vmatpush.xpose.msra.mxu0 %v1412
    %1430 = vmatmul.f32.gmra.mxu0 %v1410
    %v1431 = vpop.f32.mrf.mxu0
    %v1432 = vadd.f32 0.0, %v1431
    %1433 = vdwg.mxu0
    %v1434 = vsel %vm328, %v1405, 0
    %v1436 = vsel %vm328, %v1407, 0
    %1438 = vmatpush.xpose.msra.mxu0 0.0
    %1439 = vmatpush.xpose.msra.mxu0 0.0
    %1440 = vmatpush.xpose.msra.mxu0 0.0
    %1441 = vmatpush.xpose.msra.mxu0 0.0
    %1442 = vmatpush.xpose.msra.mxu0 0.0
    %1443 = vmatpush.xpose.msra.mxu0 0.0
    %1444 = vmatpush.xpose.msra.mxu0 0.0
    %1445 = vmatpush.xpose.msra.mxu0 0.0
    %1446 = vmatpush.xpose.msra.mxu0 0.0
    %1447 = vmatpush.xpose.msra.mxu0 0.0
    %1448 = vmatpush.xpose.msra.mxu0 0.0
    %1449 = vmatpush.xpose.msra.mxu0 0.0
    %1450 = vmatpush.xpose.msra.mxu0 0.0
    %1451 = vmatpush.xpose.msra.mxu0 0.0
    %1452 = vmatpush.xpose.msra.mxu0 0.0
    %1453 = vmatpush.xpose.msra.mxu0 %v1436
    %1454 = vmatmul.f32.gmra.mxu0 %v1434
    %v1455 = vpop.f32.mrf.mxu0
    %v1456 = vadd.f32 0.0, %v1455
    %1457 = vdwg.mxu0
    %v1458 = vsel %vm377, %v1432, -inf
    %1459 = vmax.xlane.f32.xlu0 %v1458
    %v1460 = vpop.xlane.xlu0 %1459
    %v1461 = vsel %vm377, %v1456, -inf
    %1462 = vmax.xlane.f32.xlu0 %v1461
    %v1463 = vpop.xlane.xlu0 %1462
    %v1464 = vsub.f32 %v1432, %v1460
    %v1465 = vsub.f32 %v1456, %v1463
    %v1466 = vmul.f32 %v1464, 1.442695
    %v1467 = vpow.pop %v1466
    %v1468 = vmul.f32 %v1465, 1.442695
    %v1469 = vpow.pop %v1468
    %v1470 = vsel %vm377, %v1467, 0.0
    %1471 = vadd.xlane.f32.xlu0 %v1470
    %v1472 = vpop.xlane.xlu0 %1471
    %v1473 = vsel %vm377, %v1469, 0.0
    %1474 = vadd.xlane.f32.xlu0 %v1473
    %v1475 = vpop.xlane.xlu0 %1474
    %v1476 = vrcp.pop %v1472
    %v1477 = vrcp.pop %v1475
    %v1478 = vmul.f32 %v1467, %v1476
    %v1479 = vmul.f32 %v1469, %v1477
    %v1481 = vsel %vm400, %v1478, 0
    %v1483 = vsel %vm404, %v1402, 0
    %1485 = vmatpush.msra.mxu0 0.0
    %1486 = vmatpush.msra.mxu0 0.0
    %1487 = vmatpush.msra.mxu0 0.0
    %1488 = vmatpush.msra.mxu0 0.0
    %1489 = vmatpush.msra.mxu0 0.0
    %1490 = vmatpush.msra.mxu0 0.0
    %1491 = vmatpush.msra.mxu0 0.0
    %1492 = vmatpush.msra.mxu0 0.0
    %1493 = vmatpush.msra.mxu0 0.0
    %1494 = vmatpush.msra.mxu0 0.0
    %1495 = vmatpush.msra.mxu0 0.0
    %1496 = vmatpush.msra.mxu0 0.0
    %1497 = vmatpush.msra.mxu0 0.0
    %1498 = vmatpush.msra.mxu0 0.0
    %1499 = vmatpush.msra.mxu0 0.0
    %1500 = vmatpush.msra.mxu0 %v1483
    %1501 = vmatmul.f32.gmra.mxu0 %v1481
    %v1502 = vpop.f32.mrf.mxu0
    %v1503 = vadd.f32 0.0, %v1502
    %1504 = vdwg.mxu0
    %v1506 = vsel %vm400, %v1479, 0
    %v1508 = vsel %vm404, %v1409, 0
    %1510 = vmatpush.msra.mxu0 0.0
    %1511 = vmatpush.msra.mxu0 0.0
    %1512 = vmatpush.msra.mxu0 0.0
    %1513 = vmatpush.msra.mxu0 0.0
    %1514 = vmatpush.msra.mxu0 0.0
    %1515 = vmatpush.msra.mxu0 0.0
    %1516 = vmatpush.msra.mxu0 0.0
    %1517 = vmatpush.msra.mxu0 0.0
    %1518 = vmatpush.msra.mxu0 0.0
    %1519 = vmatpush.msra.mxu0 0.0
    %1520 = vmatpush.msra.mxu0 0.0
    %1521 = vmatpush.msra.mxu0 0.0
    %1522 = vmatpush.msra.mxu0 0.0
    %1523 = vmatpush.msra.mxu0 0.0
    %1524 = vmatpush.msra.mxu0 0.0
    %1525 = vmatpush.msra.mxu0 %v1508
    %1526 = vmatmul.f32.gmra.mxu0 %v1506
    %v1527 = vpop.f32.mrf.mxu0
    %v1528 = vadd.f32 0.0, %v1527
    %1529 = vdwg.mxu0
    %1530 = vst [vmem:[#allocation1] ss:$2 sm:$0xff] %v1362
    %v1531 = vld.sshfl [vmem:[#allocation1] sm:$0xff pattern:$0x75316420]
    %1532 = vrot.lane.b32.xlu0 %v1531, 96
    %v1533 = vpop.permute.xlu0 %1532
    %1534 = vst [vmem:[#allocation1] ss:$2 sm:$0xff] %v1382
    %v1535 = vld.sshfl [vmem:[#allocation1] sm:$0xff pattern:$0x75316420]
    %1536 = vrot.lane.b32.xlu0 %v1535, 96
    %v1537 = vpop.permute.xlu0 %1536
    %v1538 = vsel %vm328, %v1533, 0
    %v1540 = vsel %vm328, %v1537, 0
    %1542 = vmatpush.xpose.msra.mxu0 0.0
    %1543 = vmatpush.xpose.msra.mxu0 0.0
    %1544 = vmatpush.xpose.msra.mxu0 0.0
    %1545 = vmatpush.xpose.msra.mxu0 0.0
    %1546 = vmatpush.xpose.msra.mxu0 0.0
    %1547 = vmatpush.xpose.msra.mxu0 0.0
    %1548 = vmatpush.xpose.msra.mxu0 0.0
    %1549 = vmatpush.xpose.msra.mxu0 0.0
    %1550 = vmatpush.xpose.msra.mxu0 0.0
    %1551 = vmatpush.xpose.msra.mxu0 0.0
    %1552 = vmatpush.xpose.msra.mxu0 0.0
    %1553 = vmatpush.xpose.msra.mxu0 0.0
    %1554 = vmatpush.xpose.msra.mxu0 0.0
    %1555 = vmatpush.xpose.msra.mxu0 0.0
    %1556 = vmatpush.xpose.msra.mxu0 0.0
    %1557 = vmatpush.xpose.msra.mxu0 %v1540
    %1558 = vmatmul.f32.gmra.mxu0 %v1538
    %v1559 = vpop.f32.mrf.mxu0
    %v1560 = vadd.f32 0.0, %v1559
    %1561 = vdwg.mxu0
    %1562 = vst [vmem:[#allocation1] ss:$2 sm:$0xff] %v1405
    %v1563 = vld.sshfl [vmem:[#allocation1] sm:$0xff pattern:$0x75316420]
    %1564 = vrot.lane.b32.xlu0 %v1563, 96
    %v1565 = vpop.permute.xlu0 %1564
    %1566 = vst [vmem:[#allocation1] ss:$2 sm:$0xff] %v1407
    %v1567 = vld.sshfl [vmem:[#allocation1] sm:$0xff pattern:$0x75316420]
    %1568 = vrot.lane.b32.xlu0 %v1567, 96
    %v1569 = vpop.permute.xlu0 %1568
    %v1570 = vsel %vm328, %v1565, 0
    %v1572 = vsel %vm328, %v1569, 0
    %1574 = vmatpush.xpose.msra.mxu0 0.0
    %1575 = vmatpush.xpose.msra.mxu0 0.0
    %1576 = vmatpush.xpose.msra.mxu0 0.0
    %1577 = vmatpush.xpose.msra.mxu0 0.0
    %1578 = vmatpush.xpose.msra.mxu0 0.0
    %1579 = vmatpush.xpose.msra.mxu0 0.0
    %1580 = vmatpush.xpose.msra.mxu0 0.0
    %1581 = vmatpush.xpose.msra.mxu0 0.0
    %1582 = vmatpush.xpose.msra.mxu0 0.0
    %1583 = vmatpush.xpose.msra.mxu0 0.0
    %1584 = vmatpush.xpose.msra.mxu0 0.0
    %1585 = vmatpush.xpose.msra.mxu0 0.0
    %1586 = vmatpush.xpose.msra.mxu0 0.0
    %1587 = vmatpush.xpose.msra.mxu0 0.0
    %1588 = vmatpush.xpose.msra.mxu0 0.0
    %1589 = vmatpush.xpose.msra.mxu0 %v1572
    %1590 = vmatmul.f32.gmra.mxu0 %v1570
    %v1591 = vpop.f32.mrf.mxu0
    %v1592 = vadd.f32 0.0, %v1591
    %1593 = vdwg.mxu0
    %v1594 = vsel %vm377, %v1560, -inf
    %1595 = vmax.xlane.f32.xlu0 %v1594
    %v1596 = vpop.xlane.xlu0 %1595
    %v1597 = vsel %vm377, %v1592, -inf
    %1598 = vmax.xlane.f32.xlu0 %v1597
    %v1599 = vpop.xlane.xlu0 %1598
    %v1600 = vsub.f32 %v1560, %v1596
    %v1601 = vsub.f32 %v1592, %v1599
    %v1602 = vmul.f32 %v1600, 1.442695
    %v1603 = vpow.pop %v1602
    %v1604 = vmul.f32 %v1601, 1.442695
    %v1605 = vpow.pop %v1604
    %v1606 = vsel %vm377, %v1603, 0.0
    %1607 = vadd.xlane.f32.xlu0 %v1606
    %v1608 = vpop.xlane.xlu0 %1607
    %v1609 = vsel %vm377, %v1605, 0.0
    %1610 = vadd.xlane.f32.xlu0 %v1609
    %v1611 = vpop.xlane.xlu0 %1610
    %v1612 = vrcp.pop %v1608
    %v1613 = vrcp.pop %v1611
    %v1614 = vmul.f32 %v1603, %v1612
    %v1615 = vmul.f32 %v1605, %v1613
    %1616 = vst [vmem:[#allocation1] ss:$2 sm:$0xff] %v1402
    %v1617 = vld.sshfl [vmem:[#allocation1] sm:$0xff pattern:$0x75316420]
    %1618 = vrot.lane.b32.xlu0 %v1617, 96
    %v1619 = vpop.permute.xlu0 %1618
    %v1621 = vsel %vm400, %v1614, 0
    %v1623 = vsel %vm404, %v1619, 0
    %1625 = vmatpush.msra.mxu0 0.0
    %1626 = vmatpush.msra.mxu0 0.0
    %1627 = vmatpush.msra.mxu0 0.0
    %1628 = vmatpush.msra.mxu0 0.0
    %1629 = vmatpush.msra.mxu0 0.0
    %1630 = vmatpush.msra.mxu0 0.0
    %1631 = vmatpush.msra.mxu0 0.0
    %1632 = vmatpush.msra.mxu0 0.0
    %1633 = vmatpush.msra.mxu0 0.0
    %1634 = vmatpush.msra.mxu0 0.0
    %1635 = vmatpush.msra.mxu0 0.0
    %1636 = vmatpush.msra.mxu0 0.0
    %1637 = vmatpush.msra.mxu0 0.0
    %1638 = vmatpush.msra.mxu0 0.0
    %1639 = vmatpush.msra.mxu0 0.0
    %1640 = vmatpush.msra.mxu0 %v1623
    %1641 = vmatmul.f32.gmra.mxu0 %v1621
    %v1642 = vpop.f32.mrf.mxu0
    %v1643 = vadd.f32 0.0, %v1642
    %1644 = vdwg.mxu0
    %1645 = vst [vmem:[#allocation1] ss:$2 sm:$0xff] %v1409
    %v1646 = vld.sshfl [vmem:[#allocation1] sm:$0xff pattern:$0x75316420]
    %1647 = vrot.lane.b32.xlu0 %v1646, 96
    %v1648 = vpop.permute.xlu0 %1647
    %v1650 = vsel %vm400, %v1615, 0
    %v1652 = vsel %vm404, %v1648, 0
    %1654 = vmatpush.msra.mxu0 0.0
    %1655 = vmatpush.msra.mxu0 0.0
    %1656 = vmatpush.msra.mxu0 0.0
    %1657 = vmatpush.msra.mxu0 0.0
    %1658 = vmatpush.msra.mxu0 0.0
    %1659 = vmatpush.msra.mxu0 0.0
    %1660 = vmatpush.msra.mxu0 0.0
    %1661 = vmatpush.msra.mxu0 0.0
    %1662 = vmatpush.msra.mxu0 0.0
    %1663 = vmatpush.msra.mxu0 0.0
    %1664 = vmatpush.msra.mxu0 0.0
    %1665 = vmatpush.msra.mxu0 0.0
    %1666 = vmatpush.msra.mxu0 0.0
    %1667 = vmatpush.msra.mxu0 0.0
    %1668 = vmatpush.msra.mxu0 0.0
    %1669 = vmatpush.msra.mxu0 %v1652
    %1670 = vmatmul.f32.gmra.mxu0 %v1650
    %v1671 = vpop.f32.mrf.mxu0
    %v1672 = vadd.f32 0.0, %v1671
    %1673 = vdwg.mxu0
    %1674 = vst [vmem:[#allocation1] ss:$2 sm:$0xff] %v1362
    %v1675 = vld.sshfl [vmem:[#allocation1] sm:$0xff pattern:$0x75316420]
    %1676 = vrot.lane.b32.xlu0 %v1675, 64
    %v1677 = vpop.permute.xlu0 %1676
    %1678 = vst [vmem:[#allocation1] ss:$2 sm:$0xff] %v1382
    %v1679 = vld.sshfl [vmem:[#allocation1] sm:$0xff pattern:$0x75316420]
    %1680 = vrot.lane.b32.xlu0 %v1679, 64
    %v1681 = vpop.permute.xlu0 %1680
    %v1682 = vsel %vm328, %v1677, 0
    %v1684 = vsel %vm328, %v1681, 0
    %1686 = vmatpush.xpose.msra.mxu0 0.0
    %1687 = vmatpush.xpose.msra.mxu0 0.0
    %1688 = vmatpush.xpose.msra.mxu0 0.0
    %1689 = vmatpush.xpose.msra.mxu0 0.0
    %1690 = vmatpush.xpose.msra.mxu0 0.0
    %1691 = vmatpush.xpose.msra.mxu0 0.0
    %1692 = vmatpush.xpose.msra.mxu0 0.0
    %1693 = vmatpush.xpose.msra.mxu0 0.0
    %1694 = vmatpush.xpose.msra.mxu0 0.0
    %1695 = vmatpush.xpose.msra.mxu0 0.0
    %1696 = vmatpush.xpose.msra.mxu0 0.0
    %1697 = vmatpush.xpose.msra.mxu0 0.0
    %1698 = vmatpush.xpose.msra.mxu0 0.0
    %1699 = vmatpush.xpose.msra.mxu0 0.0
    %1700 = vmatpush.xpose.msra.mxu0 0.0
    %1701 = vmatpush.xpose.msra.mxu0 %v1684
    %1702 = vmatmul.f32.gmra.mxu0 %v1682
    %v1703 = vpop.f32.mrf.mxu0
    %v1704 = vadd.f32 0.0, %v1703
    %1705 = vdwg.mxu0
    %1706 = vst [vmem:[#allocation1] ss:$2 sm:$0xff] %v1405
    %v1707 = vld.sshfl [vmem:[#allocation1] sm:$0xff pattern:$0x75316420]
    %1708 = vrot.lane.b32.xlu0 %v1707, 64
    %v1709 = vpop.permute.xlu0 %1708
    %1710 = vst [vmem:[#allocation1] ss:$2 sm:$0xff] %v1407
    %v1711 = vld.sshfl [vmem:[#allocation1] sm:$0xff pattern:$0x75316420]
    %1712 = vrot.lane.b32.xlu0 %v1711, 64
    %v1713 = vpop.permute.xlu0 %1712
    %v1714 = vsel %vm328, %v1709, 0
    %v1716 = vsel %vm328, %v1713, 0
    %1718 = vmatpush.xpose.msra.mxu0 0.0
    %1719 = vmatpush.xpose.msra.mxu0 0.0
    %1720 = vmatpush.xpose.msra.mxu0 0.0
    %1721 = vmatpush.xpose.msra.mxu0 0.0
    %1722 = vmatpush.xpose.msra.mxu0 0.0
    %1723 = vmatpush.xpose.msra.mxu0 0.0
    %1724 = vmatpush.xpose.msra.mxu0 0.0
    %1725 = vmatpush.xpose.msra.mxu0 0.0
    %1726 = vmatpush.xpose.msra.mxu0 0.0
    %1727 = vmatpush.xpose.msra.mxu0 0.0
    %1728 = vmatpush.xpose.msra.mxu0 0.0
    %1729 = vmatpush.xpose.msra.mxu0 0.0
    %1730 = vmatpush.xpose.msra.mxu0 0.0
    %1731 = vmatpush.xpose.msra.mxu0 0.0
    %1732 = vmatpush.xpose.msra.mxu0 0.0
    %1733 = vmatpush.xpose.msra.mxu0 %v1716
    %1734 = vmatmul.f32.gmra.mxu0 %v1714
    %v1735 = vpop.f32.mrf.mxu0
    %v1736 = vadd.f32 0.0, %v1735
    %1737 = vdwg.mxu0
    %v1738 = vsel %vm377, %v1704, -inf
    %1739 = vmax.xlane.f32.xlu0 %v1738
    %v1740 = vpop.xlane.xlu0 %1739
    %v1741 = vsel %vm377, %v1736, -inf
    %1742 = vmax.xlane.f32.xlu0 %v1741
    %v1743 = vpop.xlane.xlu0 %1742
    %v1744 = vsub.f32 %v1704, %v1740
    %v1745 = vsub.f32 %v1736, %v1743
    %v1746 = vmul.f32 %v1744, 1.442695
    %v1747 = vpow.pop %v1746
    %v1748 = vmul.f32 %v1745, 1.442695
    %v1749 = vpow.pop %v1748
    %v1750 = vsel %vm377, %v1747, 0.0
    %1751 = vadd.xlane.f32.xlu0 %v1750
    %v1752 = vpop.xlane.xlu0 %1751
    %v1753 = vsel %vm377, %v1749, 0.0
    %1754 = vadd.xlane.f32.xlu0 %v1753
    %v1755 = vpop.xlane.xlu0 %1754
    %v1756 = vrcp.pop %v1752
    %v1757 = vrcp.pop %v1755
    %v1758 = vmul.f32 %v1747, %v1756
    %v1759 = vmul.f32 %v1749, %v1757
    %1760 = vst [vmem:[#allocation1] ss:$2 sm:$0xff] %v1402
    %v1761 = vld.sshfl [vmem:[#allocation1] sm:$0xff pattern:$0x75316420]
    %1762 = vrot.lane.b32.xlu0 %v1761, 64
    %v1763 = vpop.permute.xlu0 %1762
    %v1765 = vsel %vm400, %v1758, 0
    %v1767 = vsel %vm404, %v1763, 0
    %1769 = vmatpush.msra.mxu0 0.0
    %1770 = vmatpush.msra.mxu0 0.0
    %1771 = vmatpush.msra.mxu0 0.0
    %1772 = vmatpush.msra.mxu0 0.0
    %1773 = vmatpush.msra.mxu0 0.0
    %1774 = vmatpush.msra.mxu0 0.0
    %1775 = vmatpush.msra.mxu0 0.0
    %1776 = vmatpush.msra.mxu0 0.0
    %1777 = vmatpush.msra.mxu0 0.0
    %1778 = vmatpush.msra.mxu0 0.0
    %1779 = vmatpush.msra.mxu0 0.0
    %1780 = vmatpush.msra.mxu0 0.0
    %1781 = vmatpush.msra.mxu0 0.0
    %1782 = vmatpush.msra.mxu0 0.0
    %1783 = vmatpush.msra.mxu0 0.0
    %1784 = vmatpush.msra.mxu0 %v1767
    %1785 = vmatmul.f32.gmra.mxu0 %v1765
    %v1786 = vpop.f32.mrf.mxu0
    %v1787 = vadd.f32 0.0, %v1786
    %1788 = vdwg.mxu0
    %1789 = vst [vmem:[#allocation1] ss:$2 sm:$0xff] %v1409
    %v1790 = vld.sshfl [vmem:[#allocation1] sm:$0xff pattern:$0x75316420]
    %1791 = vrot.lane.b32.xlu0 %v1790, 64
    %v1792 = vpop.permute.xlu0 %1791
    %v1794 = vsel %vm400, %v1759, 0
    %v1796 = vsel %vm404, %v1792, 0
    %1798 = vmatpush.msra.mxu0 0.0
    %1799 = vmatpush.msra.mxu0 0.0
    %1800 = vmatpush.msra.mxu0 0.0
    %1801 = vmatpush.msra.mxu0 0.0
    %1802 = vmatpush.msra.mxu0 0.0
    %1803 = vmatpush.msra.mxu0 0.0
    %1804 = vmatpush.msra.mxu0 0.0
    %1805 = vmatpush.msra.mxu0 0.0
    %1806 = vmatpush.msra.mxu0 0.0
    %1807 = vmatpush.msra.mxu0 0.0
    %1808 = vmatpush.msra.mxu0 0.0
    %1809 = vmatpush.msra.mxu0 0.0
    %1810 = vmatpush.msra.mxu0 0.0
    %1811 = vmatpush.msra.mxu0 0.0
    %1812 = vmatpush.msra.mxu0 0.0
    %1813 = vmatpush.msra.mxu0 %v1796
    %1814 = vmatmul.f32.gmra.mxu0 %v1794
    %v1815 = vpop.f32.mrf.mxu0
    %v1816 = vadd.f32 0.0, %v1815
    %1817 = vdwg.mxu0
    %1818 = vst [vmem:[#allocation1] ss:$2 sm:$0xff] %v1362
    %v1819 = vld.sshfl [vmem:[#allocation1] sm:$0xff pattern:$0x75316420]
    %1820 = vrot.lane.b32.xlu0 %v1819, 32
    %v1821 = vpop.permute.xlu0 %1820
    %1822 = vst [vmem:[#allocation1] ss:$2 sm:$0xff] %v1382
    %v1823 = vld.sshfl [vmem:[#allocation1] sm:$0xff pattern:$0x75316420]
    %1824 = vrot.lane.b32.xlu0 %v1823, 32
    %v1825 = vpop.permute.xlu0 %1824
    %v1826 = vsel %vm328, %v1821, 0
    %v1828 = vsel %vm328, %v1825, 0
    %1830 = vmatpush.xpose.msra.mxu0 0.0
    %1831 = vmatpush.xpose.msra.mxu0 0.0
    %1832 = vmatpush.xpose.msra.mxu0 0.0
    %1833 = vmatpush.xpose.msra.mxu0 0.0
    %1834 = vmatpush.xpose.msra.mxu0 0.0
    %1835 = vmatpush.xpose.msra.mxu0 0.0
    %1836 = vmatpush.xpose.msra.mxu0 0.0
    %1837 = vmatpush.xpose.msra.mxu0 0.0
    %1838 = vmatpush.xpose.msra.mxu0 0.0
    %1839 = vmatpush.xpose.msra.mxu0 0.0
    %1840 = vmatpush.xpose.msra.mxu0 0.0
    %1841 = vmatpush.xpose.msra.mxu0 0.0
    %1842 = vmatpush.xpose.msra.mxu0 0.0
    %1843 = vmatpush.xpose.msra.mxu0 0.0
    %1844 = vmatpush.xpose.msra.mxu0 0.0
    %1845 = vmatpush.xpose.msra.mxu0 %v1828
    %1846 = vmatmul.f32.gmra.mxu0 %v1826
    %v1847 = vpop.f32.mrf.mxu0
    %v1848 = vadd.f32 0.0, %v1847
    %1849 = vdwg.mxu0
    %1850 = vst [vmem:[#allocation1] ss:$2 sm:$0xff] %v1405
    %v1851 = vld.sshfl [vmem:[#allocation1] sm:$0xff pattern:$0x75316420]
    %1852 = vrot.lane.b32.xlu0 %v1851, 32
    %v1853 = vpop.permute.xlu0 %1852
    %1854 = vst [vmem:[#allocation1] ss:$2 sm:$0xff] %v1407
    %v1855 = vld.sshfl [vmem:[#allocation1] sm:$0xff pattern:$0x75316420]
    %1856 = vrot.lane.b32.xlu0 %v1855, 32
    %v1857 = vpop.permute.xlu0 %1856
    %v1858 = vsel %vm328, %v1853, 0
    %v1860 = vsel %vm328, %v1857, 0
    %1862 = vmatpush.xpose.msra.mxu0 0.0
    %1863 = vmatpush.xpose.msra.mxu0 0.0
    %1864 = vmatpush.xpose.msra.mxu0 0.0
    %1865 = vmatpush.xpose.msra.mxu0 0.0
    %1866 = vmatpush.xpose.msra.mxu0 0.0
    %1867 = vmatpush.xpose.msra.mxu0 0.0
    %1868 = vmatpush.xpose.msra.mxu0 0.0
    %1869 = vmatpush.xpose.msra.mxu0 0.0
    %1870 = vmatpush.xpose.msra.mxu0 0.0
    %1871 = vmatpush.xpose.msra.mxu0 0.0
    %1872 = vmatpush.xpose.msra.mxu0 0.0
    %1873 = vmatpush.xpose.msra.mxu0 0.0
    %1874 = vmatpush.xpose.msra.mxu0 0.0
    %1875 = vmatpush.xpose.msra.mxu0 0.0
    %1876 = vmatpush.xpose.msra.mxu0 0.0
    %1877 = vmatpush.xpose.msra.mxu0 %v1860
    %1878 = vmatmul.f32.gmra.mxu0 %v1858
    %v1879 = vpop.f32.mrf.mxu0
    %v1880 = vadd.f32 0.0, %v1879
    %1881 = vdwg.mxu0
    %v1882 = vsel %vm377, %v1848, -inf
    %1883 = vmax.xlane.f32.xlu0 %v1882
    %v1884 = vpop.xlane.xlu0 %1883
    %v1885 = vsel %vm377, %v1880, -inf
    %1886 = vmax.xlane.f32.xlu0 %v1885
    %v1887 = vpop.xlane.xlu0 %1886
    %v1888 = vsub.f32 %v1848, %v1884
    %v1889 = vsub.f32 %v1880, %v1887
    %v1890 = vmul.f32 %v1888, 1.442695
    %v1891 = vpow.pop %v1890
    %v1892 = vmul.f32 %v1889, 1.442695
    %v1893 = vpow.pop %v1892
    %v1894 = vsel %vm377, %v1891, 0.0
    %1895 = vadd.xlane.f32.xlu0 %v1894
    %v1896 = vpop.xlane.xlu0 %1895
    %v1897 = vsel %vm377, %v1893, 0.0
    %1898 = vadd.xlane.f32.xlu0 %v1897
    %v1899 = vpop.xlane.xlu0 %1898
    %v1900 = vrcp.pop %v1896
    %v1901 = vrcp.pop %v1899
    %v1902 = vmul.f32 %v1891, %v1900
    %v1903 = vmul.f32 %v1893, %v1901
    %1904 = vst [vmem:[#allocation1] ss:$2 sm:$0xff] %v1402
    %v1905 = vld.sshfl [vmem:[#allocation1] sm:$0xff pattern:$0x75316420]
    %1906 = vrot.lane.b32.xlu0 %v1905, 32
    %v1907 = vpop.permute.xlu0 %1906
    %v1909 = vsel %vm400, %v1902, 0
    %v1911 = vsel %vm404, %v1907, 0
    %1913 = vmatpush.msra.mxu0 0.0
    %1914 = vmatpush.msra.mxu0 0.0
    %1915 = vmatpush.msra.mxu0 0.0
    %1916 = vmatpush.msra.mxu0 0.0
    %1917 = vmatpush.msra.mxu0 0.0
    %1918 = vmatpush.msra.mxu0 0.0
    %1919 = vmatpush.msra.mxu0 0.0
    %1920 = vmatpush.msra.mxu0 0.0
    %1921 = vmatpush.msra.mxu0 0.0
    %1922 = vmatpush.msra.mxu0 0.0
    %1923 = vmatpush.msra.mxu0 0.0
    %1924 = vmatpush.msra.mxu0 0.0
    %1925 = vmatpush.msra.mxu0 0.0
    %1926 = vmatpush.msra.mxu0 0.0
    %1927 = vmatpush.msra.mxu0 0.0
    %1928 = vmatpush.msra.mxu0 %v1911
    %1929 = vmatmul.f32.gmra.mxu0 %v1909
    %v1930 = vpop.f32.mrf.mxu0
    %v1931 = vadd.f32 0.0, %v1930
    %1932 = vdwg.mxu0
    %1933 = vst [vmem:[#allocation1] ss:$2 sm:$0xff] %v1409
    %v1934 = vld.sshfl [vmem:[#allocation1] sm:$0xff pattern:$0x75316420]
    %1935 = vrot.lane.b32.xlu0 %v1934, 32
    %v1936 = vpop.permute.xlu0 %1935
    %v1938 = vsel %vm400, %v1903, 0
    %v1940 = vsel %vm404, %v1936, 0
    %1942 = vmatpush.msra.mxu0 0.0
    %1943 = vmatpush.msra.mxu0 0.0
    %1944 = vmatpush.msra.mxu0 0.0
    %1945 = vmatpush.msra.mxu0 0.0
    %1946 = vmatpush.msra.mxu0 0.0
    %1947 = vmatpush.msra.mxu0 0.0
    %1948 = vmatpush.msra.mxu0 0.0
    %1949 = vmatpush.msra.mxu0 0.0
    %1950 = vmatpush.msra.mxu0 0.0
    %1951 = vmatpush.msra.mxu0 0.0
    %1952 = vmatpush.msra.mxu0 0.0
    %1953 = vmatpush.msra.mxu0 0.0
    %1954 = vmatpush.msra.mxu0 0.0
    %1955 = vmatpush.msra.mxu0 0.0
    %1956 = vmatpush.msra.mxu0 0.0
    %1957 = vmatpush.msra.mxu0 %v1940
    %1958 = vmatmul.f32.gmra.mxu0 %v1938
    %v1959 = vpop.f32.mrf.mxu0
    %v1960 = vadd.f32 0.0, %v1959
    %1961 = vdwg.mxu0
    %1964 = vrot.lane.b32.xlu0 %v1643, 32
    %v1965 = vpop.permute.xlu0 %1964
    %1966 = vrot.lane.b32.xlu0 %v1672, 32
    %v1967 = vpop.permute.xlu0 %1966
    %1972 = vrot.lane.b32.xlu0 %v1787, 64
    %v1973 = vpop.permute.xlu0 %1972
    %1974 = vrot.lane.b32.xlu0 %v1816, 64
    %v1975 = vpop.permute.xlu0 %1974
    %1980 = vrot.lane.b32.xlu0 %v1931, 96
    %v1981 = vpop.permute.xlu0 %1980
    %1982 = vrot.lane.b32.xlu0 %v1960, 96
    %v1983 = vpop.permute.xlu0 %1982
    %v1986 = vsel %vm328, %v1503, %v1965
    %v1987 = vsel %vm328, %v1528, %v1967
    %v1988 = vsel %vm910, %v1986, %v1973
    %v1989 = vsel %vm910, %v1987, %v1975
    %v1990 = vsel %vm913, %v1988, %v1981
    %v1991 = vsel %vm913, %v1989, %v1983
    %1994 = vst [vmem:[#allocation1] ss:$2 sm:$0xff] %v1990
    %s1995 = scalar_lea.vmem [#allocation1], 1
    %1996 = vst [vmem:[%s1995] ss:$2 sm:$0xff] %v1991
    %v1997 = vld.sshfl [vmem:[#allocation1] sm:$0xff pattern:$0x75316420]
    %1999 = vmatpush.msra.mxu0 %v1255
    %2000 = vmatpush.msra.mxu0 %v1254
    %2001 = vmatpush.msra.mxu0 %v1253
    %2002 = vmatpush.msra.mxu0 %v1252
    %2003 = vmatpush.msra.mxu0 %v1251
    %2004 = vmatpush.msra.mxu0 %v1250
    %2005 = vmatpush.msra.mxu0 %v1249
    %2006 = vmatpush.msra.mxu0 %v1248
    %2007 = vmatpush.msra.mxu0 %v1247
    %2008 = vmatpush.msra.mxu0 %v1246
    %2009 = vmatpush.msra.mxu0 %v1245
    %2010 = vmatpush.msra.mxu0 %v1244
    %2011 = vmatpush.msra.mxu0 %v1243
    %2012 = vmatpush.msra.mxu0 %v1242
    %2013 = vmatpush.msra.mxu0 %v1241
    %2014 = vmatpush.msra.mxu0 %v1240
    %2015 = vmatmul.f32.gmra.mxu0 %v1997
    %v2016 = vpop.f32.mrf.mxu0
    %v2017 = vadd.f32 %v1322, %v2016
    %2018 = vdwg.mxu0
    %v2020 = vrot.slane %v2017, 4
    %v2022 = vadd.f32 %v1190, %v2017
    %v2023 = vadd.f32 %v1191, %v2020
    %2026 = vst [vmem:[#allocation1] ss:$2 sm:$0xff] %v2022
    %s2027 = scalar_lea.vmem [#allocation1], 1
    %2028 = vst [vmem:[%s2027] ss:$2 sm:$0xff] %v2023
    %v2029 = vld.sshfl [vmem:[#allocation1] sm:$0xff pattern:$0x75316420]
    %2031 = vadd.xlane.f32.xlu0 %v2029
    %v2032 = vpop.xlane.xlu0 %2031
    %v2033 = vmul.f32 %v2032, %v963
    %v2036 = vunpack.c.l.s4 839922192
    %v2037 = vunpack.c.0.s8 %v2036
    %v2038 = vperm.slane %v2033, %v2037
    %v2040 = vunpack.c.l.s4 1985246804
    %v2041 = vunpack.c.0.s8 %v2040
    %v2042 = vperm.slane %v2033, %v2041
    %v2045 = vsub.f32 %v2022, %v2038
    %v2046 = vsub.f32 %v2023, %v2042
    %v2047 = vmul.f32 %v2045, %v2045
    %v2048 = vmul.f32 %v2046, %v2046
    %2051 = vst [vmem:[#allocation1] ss:$2 sm:$0xff] %v2047
    %s2052 = scalar_lea.vmem [#allocation1], 1
    %2053 = vst [vmem:[%s2052] ss:$2 sm:$0xff] %v2048
    %v2054 = vld.sshfl [vmem:[#allocation1] sm:$0xff pattern:$0x75316420]
    %2056 = vadd.xlane.f32.xlu0 %v2054
    %v2057 = vpop.xlane.xlu0 %2056
    %v2058 = vmul.f32 %v2057, %v963
    %v2059 = vadd.f32 %v2058, 1e-05
    %v2060 = vrsqrt.pop %v2059
    %v2061 = vmul.f32 %v2060, %v2059
    %v2062 = vmul.f32 %v2061, %v2060
    %v2063 = vmul.f32 0.5, %v2062
    %v2064 = vsub.f32 1.5, %v2063
    %v2065 = vmul.f32 %v2060, %v2064
    %vm2066 = vweird.f32 %v2059
    %vm2067 = vweird.f32 %v2060
    %vm2068 = vmor %vm2066, %vm2067
    %v2069 = vsel %vm2068, %v2060, %v2065
    %v2072 = vunpack.c.l.s4 839922192
    %v2073 = vunpack.c.0.s8 %v2072
    %v2074 = vperm.slane %v2069, %v2073
    %v2076 = vunpack.c.l.s4 1985246804
    %v2077 = vunpack.c.0.s8 %v2076
    %v2078 = vperm.slane %v2069, %v2077
    %v2081 = vmul.f32 %v2045, %v2074
    %v2082 = vmul.f32 %v2046, %v2078
    %v2084 = vrot.slane %v1326, 4
    %v2086 = vmul.f32 %v2081, %v1326
    %v2087 = vmul.f32 %v2082, %v2084
    %v2089 = vrot.slane %v1327, 4
    %v2091 = vadd.f32 %v2086, %v1327
    %v2092 = vadd.f32 %v2087, %v2089
    %v2094 = vperm.slane %v1324, 0
    %v2095 = vperm.slane %v1324, 1
    %2100 = vst [vmem:[#allocation1] ss:$2 sm:$0xff] %v2091
    %s2101 = scalar_lea.vmem [#allocation1], 1
    %2102 = vst [vmem:[%s2101] ss:$2 sm:$0xff] %v2092
    %v2103 = vld.sshfl [vmem:[#allocation1] sm:$0xff pattern:$0x75316420]
    %2105 = vmatpush.msra.mxu0 %v1286
    %2106 = vmatpush.msra.mxu0 %v1284
    %2107 = vmatpush.msra.mxu0 %v1282
    %2108 = vmatpush.msra.mxu0 %v1280
    %2109 = vmatpush.msra.mxu0 %v1278
    %2110 = vmatpush.msra.mxu0 %v1276
    %2111 = vmatpush.msra.mxu0 %v1274
    %2112 = vmatpush.msra.mxu0 %v1272
    %2113 = vmatpush.msra.mxu0 %v1270
    %2114 = vmatpush.msra.mxu0 %v1268
    %2115 = vmatpush.msra.mxu0 %v1266
    %2116 = vmatpush.msra.mxu0 %v1264
    %2117 = vmatpush.msra.mxu0 %v1262
    %2118 = vmatpush.msra.mxu0 %v1260
    %2119 = vmatpush.msra.mxu0 %v1258
    %2120 = vmatpush.msra.mxu0 %v1256
    %2121 = vmatmul.f32.gmra.mxu0 %v2103
    %v2122 = vpop.f32.mrf.mxu0
    %v2123 = vadd.f32 %v2094, %v2122
    %2124 = vdwg.mxu0
    %2125 = vmatpush.msra.mxu0 %v1287
    %2126 = vmatpush.msra.mxu0 %v1285
    %2127 = vmatpush.msra.mxu0 %v1283
    %2128 = vmatpush.msra.mxu0 %v1281
    %2129 = vmatpush.msra.mxu0 %v1279
    %2130 = vmatpush.msra.mxu0 %v1277
    %2131 = vmatpush.msra.mxu0 %v1275
    %2132 = vmatpush.msra.mxu0 %v1273
    %2133 = vmatpush.msra.mxu0 %v1271
    %2134 = vmatpush.msra.mxu0 %v1269
    %2135 = vmatpush.msra.mxu0 %v1267
    %2136 = vmatpush.msra.mxu0 %v1265
    %2137 = vmatpush.msra.mxu0 %v1263
    %2138 = vmatpush.msra.mxu0 %v1261
    %2139 = vmatpush.msra.mxu0 %v1259
    %2140 = vmatpush.msra.mxu0 %v1257
    %2141 = vmatmul.f32.gmra.mxu0 %v2103
    %v2142 = vpop.f32.mrf.mxu0
    %v2143 = vadd.f32 %v2095, %v2142
    %2144 = vdwg.mxu0
    %v2145 = vmax.f32 %v2123, 0.0
    %v2146 = vmax.f32 %v2143, 0.0
    %2147 = vmatpush.msra.mxu0 %v1303
    %2148 = vmatpush.msra.mxu0 %v1302
    %2149 = vmatpush.msra.mxu0 %v1301
    %2150 = vmatpush.msra.mxu0 %v1300
    %2151 = vmatpush.msra.mxu0 %v1299
    %2152 = vmatpush.msra.mxu0 %v1298
    %2153 = vmatpush.msra.mxu0 %v1297
    %2154 = vmatpush.msra.mxu0 %v1296
    %2155 = vmatpush.msra.mxu0 %v1295
    %2156 = vmatpush.msra.mxu0 %v1294
    %2157 = vmatpush.msra.mxu0 %v1293
    %2158 = vmatpush.msra.mxu0 %v1292
    %2159 = vmatpush.msra.mxu0 %v1291
    %2160 = vmatpush.msra.mxu0 %v1290
    %2161 = vmatpush.msra.mxu0 %v1289
    %2162 = vmatpush.msra.mxu0 %v1288
    %2163 = vmatmul.f32.gmra.mxu0 %v2145
    %v2164 = vpop.f32.mrf.mxu0
    %v2165 = vadd.f32 %v1325, %v2164
    %2166 = vdwg.mxu0
    %2167 = vmatpush.msra.mxu0 %v1319
    %2168 = vmatpush.msra.mxu0 %v1318
    %2169 = vmatpush.msra.mxu0 %v1317
    %2170 = vmatpush.msra.mxu0 %v1316
    %2171 = vmatpush.msra.mxu0 %v1315
    %2172 = vmatpush.msra.mxu0 %v1314
    %2173 = vmatpush.msra.mxu0 %v1313
    %2174 = vmatpush.msra.mxu0 %v1312
    %2175 = vmatpush.msra.mxu0 %v1311
    %2176 = vmatpush.msra.mxu0 %v1310
    %2177 = vmatpush.msra.mxu0 %v1309
    %2178 = vmatpush.msra.mxu0 %v1308
    %2179 = vmatpush.msra.mxu0 %v1307
    %2180 = vmatpush.msra.mxu0 %v1306
    %2181 = vmatpush.msra.mxu0 %v1305
    %2182 = vmatpush.msra.mxu0 %v1304
    %2183 = vmatmul.f32.gmra.mxu0 %v2146
    %v2184 = vpop.f32.mrf.mxu0
    %v2185 = vadd.f32 %v2165, %v2184
    %2186 = vdwg.mxu0
    %v2188 = vrot.slane %v2185, 4
    %v2190 = vadd.f32 %v2091, %v2185
    %v2191 = vadd.f32 %v2092, %v2188
    %2194 = vst [vmem:[#allocation1] ss:$2 sm:$0xff] %v2190
    %s2195 = scalar_lea.vmem [#allocation1], 1
    %2196 = vst [vmem:[%s2195] ss:$2 sm:$0xff] %v2191
    %v2197 = vld.sshfl [vmem:[#allocation1] sm:$0xff pattern:$0x75316420]
    %2199 = vadd.xlane.f32.xlu0 %v2197
    %v2200 = vpop.xlane.xlu0 %2199
    %v2201 = vmul.f32 %v2200, %v963
    %v2204 = vunpack.c.l.s4 839922192
    %v2205 = vunpack.c.0.s8 %v2204
    %v2206 = vperm.slane %v2201, %v2205
    %v2208 = vunpack.c.l.s4 1985246804
    %v2209 = vunpack.c.0.s8 %v2208
    %v2210 = vperm.slane %v2201, %v2209
    %v2213 = vsub.f32 %v2190, %v2206
    %v2214 = vsub.f32 %v2191, %v2210
    %v2215 = vmul.f32 %v2213, %v2213
    %v2216 = vmul.f32 %v2214, %v2214
    %2219 = vst [vmem:[#allocation1] ss:$2 sm:$0xff] %v2215
    %s2220 = scalar_lea.vmem [#allocation1], 1
    %2221 = vst [vmem:[%s2220] ss:$2 sm:$0xff] %v2216
    %v2222 = vld.sshfl [vmem:[#allocation1] sm:$0xff pattern:$0x75316420]
    %2224 = vadd.xlane.f32.xlu0 %v2222
    %v2225 = vpop.xlane.xlu0 %2224
    %v2226 = vmul.f32 %v2225, %v963
    %v2227 = vadd.f32 %v2226, 1e-05
    %v2228 = vrsqrt.pop %v2227
    %v2229 = vmul.f32 %v2228, %v2227
    %v2230 = vmul.f32 %v2229, %v2228
    %v2231 = vmul.f32 0.5, %v2230
    %v2232 = vsub.f32 1.5, %v2231
    %v2233 = vmul.f32 %v2228, %v2232
    %vm2234 = vweird.f32 %v2227
    %vm2235 = vweird.f32 %v2228
    %vm2236 = vmor %vm2234, %vm2235
    %v2237 = vsel %vm2236, %v2228, %v2233
    %v2240 = vunpack.c.l.s4 839922192
    %v2241 = vunpack.c.0.s8 %v2240
    %v2242 = vperm.slane %v2237, %v2241
    %v2244 = vunpack.c.l.s4 1985246804
    %v2245 = vunpack.c.0.s8 %v2244
    %v2246 = vperm.slane %v2237, %v2245
    %v2249 = vmul.f32 %v2213, %v2242
    %v2250 = vmul.f32 %v2214, %v2246
    %v2252 = vrot.slane %v1328, 4
    %v2254 = vmul.f32 %v2249, %v1328
    %v2255 = vmul.f32 %v2250, %v2252
    %v2257 = vrot.slane %v1329, 4
    %v2259 = vadd.f32 %v2254, %v1329
    %v2260 = vadd.f32 %v2255, %v2257
    %v2261 = vsel %vm404, %v2259, 0.0
    %v2262 = vrot.slane %v2261, 4
    %v2263 = vadd.f32 %v2261, %v2262
    %v2264 = vrot.slane %v2263, 2
    %v2265 = vadd.f32 %v2263, %v2264
    %v2266 = vrot.slane %v2265, 1
    %v2267 = vadd.f32 %v2265, %v2266
    %v2268 = vsel %vm404, %v2260, 0.0
    %v2269 = vrot.slane %v2268, 4
    %v2270 = vadd.f32 %v2268, %v2269
    %v2271 = vrot.slane %v2270, 2
    %v2272 = vadd.f32 %v2270, %v2271
    %v2273 = vrot.slane %v2272, 1
    %v2274 = vadd.f32 %v2272, %v2273
    %v2275 = vrcp.pop 4.0
    %v2276 = vmul.f32 4.0, %v2275
    %v2277 = vsub.f32 1.0, %v2276
    %v2278 = vmul.f32 %v2275, %v2277
    %v2279 = vadd.f32 %v2275, %v2278
    %vm2280 = vweird.f32 %v2275
    %v2281 = vsel %vm2280, %v2275, %v2279
    %v2282 = vmul.f32 %v2267, %v2281
    %v2283 = vmul.f32 %v2274, %v2281
    %v2284 = vld [vmem:[#allocation5 + $0x60] sm:$0xff]
    %v2285 = vld [vmem:[#allocation5 + $0xc8] sm:$0xff]
    %v2286 = vld [vmem:[#allocation5 + $0x130] sm:$0xff]
    %v2287 = vld [vmem:[#allocation5 + $0x198] sm:$0xff]
    %v2288 = vld [vmem:[#allocation5 + $0x200] sm:$0xff]
    %v2289 = vld [vmem:[#allocation5 + $0x268] sm:$0xff]
    %v2290 = vld [vmem:[#allocation5 + $0x2d0] sm:$0xff]
    %v2291 = vld [vmem:[#allocation5 + $0x338] sm:$0xff]
    %v2292 = vld [vmem:[#allocation5 + $0x3a0] sm:$0xff]
    %v2293 = vld [vmem:[#allocation5 + $0x408] sm:$0xff]
    %v2294 = vld [vmem:[#allocation5 + $0x470] sm:$0xff]
    %v2295 = vld [vmem:[#allocation5 + $0x4d8] sm:$0xff]
    %v2296 = vld [vmem:[#allocation5 + $0x540] sm:$0xff]
    %v2297 = vld [vmem:[#allocation5 + $0x5a8] sm:$0xff]
    %v2298 = vld [vmem:[#allocation5 + $0x610] sm:$0xff]
    %v2299 = vld [vmem:[#allocation5 + $0x678] sm:$0xff]
    %v2300 = vld [vmem:[#allocation2 + $0x2] ss:$0 sm:$0xff]
    %vm2303 = vcmask 1041409
    %v2304 = vsel %vm2303, %v2283, %v2282
    %2306 = vmatpush.msra.mxu0 %v2299
    %2307 = vmatpush.msra.mxu0 %v2298
    %2308 = vmatpush.msra.mxu0 %v2297
    %2309 = vmatpush.msra.mxu0 %v2296
    %2310 = vmatpush.msra.mxu0 %v2295
    %2311 = vmatpush.msra.mxu0 %v2294
    %2312 = vmatpush.msra.mxu0 %v2293
    %2313 = vmatpush.msra.mxu0 %v2292
    %2314 = vmatpush.msra.mxu0 %v2291
    %2315 = vmatpush.msra.mxu0 %v2290
    %2316 = vmatpush.msra.mxu0 %v2289
    %2317 = vmatpush.msra.mxu0 %v2288
    %2318 = vmatpush.msra.mxu0 %v2287
    %2319 = vmatpush.msra.mxu0 %v2286
    %2320 = vmatpush.msra.mxu0 %v2285
    %2321 = vmatpush.msra.mxu0 %v2284
    %2322 = vmatmul.f32.gmra.mxu0 %v2304
    %v2323 = vpop.f32.mrf.mxu0
    %v2324 = vadd.f32 %v2300, %v2323
    %2325 = vdwg.mxu0
    %2326 = vst [vmem:[#allocation8] sm:$0x3] %v2324
    // Predicated region
    $region30: #{tpu_custom_call.1} parent=1 // pred_check
      _
    $region31: #{tpu_custom_call.1} parent=1 // pred_check_branch
      %2328 = sbr.rel (0) target = $region33
    $region32: #{tpu_custom_call.1} parent=1 // pred_region
      %2330 = vsyncadd [#allocation4], 0
      %s2332 = sshll.u32 [#allocation8], 4
      %s2333 = int_to_ptr.vmem [resolvable:$true] %s2332
      %s2334 = sshll.u32 %s4, 4
      %s2335 = int_to_ptr.hbm [resolvable:$true] %s2334
      %2337 = dma.vmem_to_hbm [thread:$0]  %s2333, 32, %s2335, [#allocation4]
    $region33: #{tpu_custom_call.1} parent=1 // pred_fallthru
      _
    // Predicated region
    $region34: #{tpu_custom_call.1} parent=1 // pred_check
      _
    $region35: #{tpu_custom_call.1} parent=1 // pred_check_branch
      %2339 = sbr.rel (0) target = $region37
    $region36: #{tpu_custom_call.1} parent=1 // pred_region
      %2341 = dma.done [#allocation4], 32
    $region37: #{tpu_custom_call.1} parent=1 // pred_fallthru
      _
    %2342 = vsyncpa [#allocation3], 1
    %2343 = vsyncpa [#allocation6], 1
    %2344 = vsyncpa [#allocation4], 1

</llo_original>
